<compile_context>
chip_gen: v7x
topology: tpu7x:2x2x1
jax: 0.10.0
libtpu: 0.0.40
codegen_flags: <defaults>
</compile_context>

<pallas_src>
import functools
import numpy as np
import jax
import jax.numpy as jnp
from jax import lax
from jax.experimental import pallas as pl
from jax.experimental.pallas import tpu as pltpu


def _round_up(v, m):
    return (v + m - 1) // m * m


def _pick_tile(po, cap=16):
    """Largest divisor of po that is <= cap (pooled rows per grid step)."""
    best = 1
    for d in range(1, min(po, cap) + 1):
        if po % d == 0:
            best = d
    return best


# ----------------------------------------------------------------------------
# Fused kernel: conv(7x7,s2) + folded BN + ReLU + maxpool(3x3,s2,p1)
# ----------------------------------------------------------------------------
def _fused_stem_kernel(u_ref, w_ref, s_ref, b_ref, o_ref, wm_ref, wm2_ref,
                       *, Tp, Wo, Pw):
    """u_ref:  (1, (Ho+4)*Wo, 42) bf16 resident per-image slab
               row i*Wo+ow holds x_pad[2(i-1)+dh, 2ow+kw, c] packed as k2=dh*21+kw*3+c
               (row block i=0 is a zero top-pad row).
       w_ref:  (4, 42, Cp) bf16 repacked conv weights (row-pair taps g=kh//2)
       s_ref/b_ref: (1, Cp) f32 folded BN affine
       o_ref:  (1, Tp, Pw, Cp) bf16 pooled output tile
       wm_ref: (R, Wo+8, Cp) f32 scratch (conv rows, 8-wide zero left border)
       wm2_ref:(R, Pw, Cp)  f32 scratch (kw-pooled rows), R = 2*Tp+1."""
    t = pl.program_id(1)
    R = 2 * Tp + 1                       # conv rows for this pooled-row tile (incl. halo)
    Mt = R * Wo
    Cp = o_ref.shape[-1]
    row0 = 2 * t * Tp                    # slab row of the first needed row-pair (g=0)
                                         # == (2*p0 - 1) + 1 top-pad shift

    # ---- conv: 4 accumulated MXU matmuls over row-pair taps (K = 2*7*3 = 42) ----------
    acc = None
    for g in range(4):
        start = pl.multiple_of((row0 + g) * Wo, 8)
        lhs = u_ref[0, pl.ds(start, Mt), :]                       # (Mt, 42) bf16
        part = jnp.dot(lhs, w_ref[g], preferred_element_type=jnp.float32)
        acc = part if acc is None else acc + part                 # (Mt, Cp) f32

    # ---- folded BatchNorm + ReLU epilogue (f32, VPU) ----------------------------------
    y = jnp.maximum(acc * s_ref[...] + b_ref[...], 0.0)           # (Mt, Cp)

    # ---- stage conv rows with an 8-column zero left border (aligned stores) -----------
    wm_ref[:, 0:8, :] = jnp.zeros((R, 8, Cp), jnp.float32)
    wm_ref[:, 8:8 + Wo, :] = y.reshape(R, Wo, Cp)

    @pl.when(t == 0)
    def _():
        # pooled row 0's top window row is maxpool padding -> must be zero
        # (zero is a valid pad because values are post-ReLU, >= 0)
        wm_ref[0] = jnp.zeros((Wo + 8, Cp), jnp.float32)

    # ---- kw-direction max + stride-2 column subsample: 3 sublane-strided loads --------
    left = wm_ref[:, pl.ds(7, Pw, stride=2), :]                   # cols 2*pw-1 (pad at pw=0)
    cen = wm_ref[:, pl.ds(8, Pw, stride=2), :]                    # cols 2*pw
    right = wm_ref[:, pl.ds(9, Pw, stride=2), :]                  # cols 2*pw+1
    wm2_ref[...] = jnp.maximum(cen, jnp.maximum(left, right))     # (R, Pw, Cp)

    # ---- kh-direction max + stride-2 row subsample: leading-dim strided reads ---------
    r0 = wm2_ref[pl.ds(0, Tp, stride=2)]
    r1 = wm2_ref[pl.ds(1, Tp, stride=2)]
    r2 = wm2_ref[pl.ds(2, Tp, stride=2)]
    o_ref[0] = jnp.maximum(r0, jnp.maximum(r1, r2)).astype(o_ref.dtype)


def fused_stem(u2f, w3, scale, bias, *, N, Wo, Po, Pw, Tp, Cp):
    S = u2f.shape[1]
    K2 = u2f.shape[2]
    R = 2 * Tp + 1
    kernel = functools.partial(_fused_stem_kernel, Tp=Tp, Wo=Wo, Pw=Pw)
    return pl.pallas_call(
        kernel,
        out_shape=jax.ShapeDtypeStruct((N, Po, Pw, Cp), jnp.bfloat16),
        grid_spec=pltpu.PrefetchScalarGridSpec(
            num_scalar_prefetch=0,
            grid=(N, Po // Tp),
            in_specs=[
                # whole per-image slab, resident across the pooled-row-tile axis
                pl.BlockSpec((1, S, K2), lambda n, t: (n, 0, 0)),
                pl.BlockSpec(w3.shape, lambda n, t: (0, 0, 0)),
                pl.BlockSpec((1, Cp), lambda n, t: (0, 0)),
                pl.BlockSpec((1, Cp), lambda n, t: (0, 0)),
            ],
            out_specs=pl.BlockSpec((1, Tp, Pw, Cp), lambda n, t: (n, t, 0, 0)),
            scratch_shapes=[
                pltpu.VMEM((R, Wo + 8, Cp), jnp.float32),
                pltpu.VMEM((R, Pw, Cp), jnp.float32),
            ],
        ),
        compiler_params=pltpu.CompilerParams(
            # both axes independent: output tiles are disjoint, scratch fully rewritten
            dimension_semantics=("parallel", "parallel"),
            # row-tiled working set is ~15-20 MB even at 224x224; 64 MiB leaves headroom
            vmem_limit_bytes=64 * 1024 * 1024,
        ),
    )(u2f, w3, scale, bias)


# ----------------------------------------------------------------------------
# PrefixResnet forward (depth = 4)
# ----------------------------------------------------------------------------
@jax.jit
def prefix_resnet_forward(x_nchw, params):
    eps = 1e-5
    w = params["conv1_w"]                       # (Cout, Cin, 7, 7), PyTorch OIHW
    N, Cin, H, W = x_nchw.shape
    Cout, _, KH, KW = w.shape
    assert (KH, KW) == (7, 7)
    assert H % 4 == 0 and W % 4 == 0, "spatial dims must be multiples of 4"
    Ho, Wo = H // 2, W // 2                     # conv 7x7 / s2 / p3 output
    Po, Pw = Ho // 2, Wo // 2                   # maxpool 3x3 / s2 / p1 output
    assert Wo % 8 == 0, "Wo must be a multiple of 8 (relayout-free staging)"
    # TODO(synk): pad Wo/Pw up to the next multiple of 8 for arbitrary input widths.
    Cp = _round_up(Cout, 128)                   # lane-dense channel dim
    K2 = 2 * KW * Cin                           # 42 = (row-pair dh) x kw x cin
    Hp = H + 6

    # --- XLA glue (all ~input-sized; no dense im2col in HBM any more) ----------------
    x = jnp.transpose(x_nchw, (0, 2, 3, 1)).astype(jnp.bfloat16)      # NHWC bf16
    x_pad = jnp.pad(x, ((0, 0), (3, 3), (3, 3), (0, 0)))              # (N, Hp, Wp, Cin)
    # kw-unfold (stride-2 column phases): U[n,h,ow,kw,c] = x_pad[n, h, 2*ow+kw, c]
    U = jnp.stack([x_pad[:, :, kw:kw + 2 * Wo:2, :] for kw in range(KW)], axis=3)
    # pair adjacent padded rows into the contraction dim: k2 = dh*21 + kw*3 + c
    U2 = U.reshape(N, Hp // 2, 2, Wo, KW, Cin)
    U2 = jnp.transpose(U2, (0, 1, 3, 2, 4, 5)).reshape(N, Hp // 2, Wo, K2)
    # one zero row on top (top halo / pool padding of the first tile), flatten rows
    U2 = jnp.pad(U2, ((0, 0), (1, 0), (0, 0), (0, 0)))                # (N, Ho+4, Wo, 42)
    u2f = U2.reshape(N, (Ho + 4) * Wo, K2)

    # weights: W3[g, dh*21 + kw*3 + c, f] = W[f, c, 2g+dh, kw]  (the kh=7 row is zero)
    wt = jnp.transpose(w, (2, 3, 1, 0))                               # (KH, KW, Cin, Cout)
    wt = jnp.pad(wt, ((0, 1), (0, 0), (0, 0), (0, Cp - Cout)))        # (8, 7, 3, Cp)
    w3 = wt.reshape(4, K2, Cp).astype(jnp.bfloat16)

    # eval-mode BatchNorm folded into an affine (f32; zero in padded channels)
    inv_std = 1.0 / jnp.sqrt(params["bn_var"] + eps)
    scale = params["bn_gamma"] * inv_std
    bias = params["bn_beta"] - params["bn_mean"] * scale
    scale = jnp.pad(scale, (0, Cp - Cout)).reshape(1, Cp).astype(jnp.float32)
    bias = jnp.pad(bias, (0, Cp - Cout)).reshape(1, Cp).astype(jnp.float32)

    # --- fused hot path -----------------------------------------------------------------
    Tp = _pick_tile(Po, cap=16)                 # pooled rows per grid step (VMEM-bounded)
    pooled = fused_stem(u2f, w3, scale, bias,
                        N=N, Wo=Wo, Po=Po, Pw=Pw, Tp=Tp, Cp=Cp)       # (N, Po, Pw, Cp) bf16

    # TODO(synk): downstream consumers should take the NHWC bf16 output directly; the
    # slice + transpose below only restore the PyTorch NCHW float32 contract.
    return jnp.transpose(pooled[:, :, :, :Cout], (0, 3, 1, 2)).astype(jnp.float32)


# ----------------------------------------------------------------------------
# Pure-JAX reference (f32) for the correctness check
# ----------------------------------------------------------------------------
def reference(x_nchw, params):
    eps = 1e-5
    conv = lax.conv_general_dilated(
        x_nchw, params["conv1_w"], window_strides=(2, 2),
        padding=((3, 3), (3, 3)), dimension_numbers=("NCHW", "OIHW", "NCHW"))
    scale = params["bn_gamma"] / jnp.sqrt(params["bn_var"] + eps)
    bias = params["bn_beta"] - params["bn_mean"] * scale
    y = jnp.maximum(conv * scale[None, :, None, None] + bias[None, :, None, None], 0.0)
    pooled = lax.reduce_window(
        y, -jnp.inf, lax.max,
        window_dimensions=(1, 1, 3, 3), window_strides=(1, 1, 2, 2),
        padding=((0, 0), (0, 0), (1, 1), (1, 1)))
    return pooled


if __name__ == "__main__":
    # args = {'depth': 4, 'kernel_size': 7, 'in_channel': 3}  (kernel_size/in_channel unused)
    key = jax.random.PRNGKey(0)
    kx, kw, kg, kb, km, kv = jax.random.split(key, 6)

    N, Cin, H, W = 2, 3, 32, 32
    Cout = 64
    x = jax.random.normal(kx, (N, Cin, H, W), dtype=jnp.float32)

    params = {
        "conv1_w": jax.random.normal(kw, (Cout, Cin, 7, 7), dtype=jnp.float32) * 0.05,
        "bn_gamma": 1.0 + 0.1 * jax.random.normal(kg, (Cout,), dtype=jnp.float32),
        "bn_beta": 0.1 * jax.random.normal(kb, (Cout,), dtype=jnp.float32),
        "bn_mean": 0.1 * jax.random.normal(km, (Cout,), dtype=jnp.float32),
        "bn_var": 0.5 + jnp.abs(jax.random.normal(kv, (Cout,), dtype=jnp.float32)),
    }

    out = jax.block_until_ready(prefix_resnet_forward(x, params))
    assert out.shape == (N, Cout, H // 4, W // 4), out.shape

    ref = jax.block_until_ready(reference(x, params))
    # bf16 matmul operands + bf16 pooled store vs. pure-f32 reference
    np.testing.assert_allclose(np.asarray(out), np.asarray(ref), rtol=3e-2, atol=3e-2)

    print("KERNEL_OK")
</pallas_src>

<mosaic_0001>
module attributes {stable_mosaic.version = 11 : i64} {
  func.func @_fused_stem_kernel(%arg0: i32, %arg1: i32, %arg2: memref<1x320x42xbf16, #tpu.memory_space<vmem>>, %arg3: memref<4x42x128xbf16, #tpu.memory_space<vmem>>, %arg4: memref<1x128xf32, #tpu.memory_space<vmem>>, %arg5: memref<1x128xf32, #tpu.memory_space<vmem>>, %arg6: memref<1x8x8x128xbf16, #tpu.memory_space<vmem>>, %arg7: memref<17x24x128xf32, #tpu.memory_space<vmem>>, %arg8: memref<17x8x128xf32, #tpu.memory_space<vmem>>) attributes {dimension_semantics = [#tpu.dimension_semantics<parallel>, #tpu.dimension_semantics<parallel>], iteration_bounds = array<i64: 2, 1>, scalar_prefetch = 0 : i64, scratch_operands = 2 : i64, tpu.core_type = #tpu.core_type<tc>, window_params = [{transform_indices = @transform_0, window_bounds = array<i64: 1, 320, 42>}, {pipeline_mode = #tpu.pipeline_mode<synchronous>, transform_indices = @transform_1, window_bounds = array<i64: 4, 42, 128>}, {pipeline_mode = #tpu.pipeline_mode<synchronous>, transform_indices = @transform_2, window_bounds = array<i64: 1, 128>}, {pipeline_mode = #tpu.pipeline_mode<synchronous>, transform_indices = @transform_3, window_bounds = array<i64: 1, 128>}, {transform_indices = @transform_4, window_bounds = array<i64: 1, 8, 8, 128>}]} {
    %c2_i32 = arith.constant 2 : i32
    %0 = arith.muli %c2_i32, %arg1 : i32
    %c8_i32 = arith.constant 8 : i32
    %1 = arith.muli %0, %c8_i32 : i32
    %c0_i32 = arith.constant 0 : i32
    %2 = arith.addi %1, %c0_i32 : i32
    %c16_i32 = arith.constant 16 : i32
    %3 = arith.muli %2, %c16_i32 : i32
    %4 = tpu.assume_multiple %3, 8 : i32
    %c0 = arith.constant 0 : index
    %5 = arith.index_cast %4 : i32 to index
    %c0_0 = arith.constant 0 : index
    %6 = vector.load %arg2[%c0, %5, %c0_0] : memref<1x320x42xbf16, #tpu.memory_space<vmem>>, vector<1x272x42xbf16>
    %7 = vector.shape_cast %6 : vector<1x272x42xbf16> to vector<272x42xbf16>
    %c0_1 = arith.constant 0 : index
    %c0_2 = arith.constant 0 : index
    %c0_3 = arith.constant 0 : index
    %8 = vector.load %arg3[%c0_1, %c0_2, %c0_3] : memref<4x42x128xbf16, #tpu.memory_space<vmem>>, vector<1x42x128xbf16>
    %9 = vector.shape_cast %8 : vector<1x42x128xbf16> to vector<42x128xbf16>
    %cst = arith.constant dense<0.000000e+00> : vector<272x128xf32>
    %10 = tpu.matmul %7, %9, %cst {dimension_numbers = #tpu.dot_dimension_numbers<[1], [0], [0], [1], [0, 0, 1, 1], [], []>} : vector<272x42xbf16>, vector<42x128xbf16>, vector<272x128xf32> -> vector<272x128xf32>
    %c1_i32 = arith.constant 1 : i32
    %11 = arith.addi %1, %c1_i32 : i32
    %c16_i32_4 = arith.constant 16 : i32
    %12 = arith.muli %11, %c16_i32_4 : i32
    %13 = tpu.assume_multiple %12, 8 : i32
    %c0_5 = arith.constant 0 : index
    %14 = arith.index_cast %13 : i32 to index
    %c0_6 = arith.constant 0 : index
    %15 = vector.load %arg2[%c0_5, %14, %c0_6] : memref<1x320x42xbf16, #tpu.memory_space<vmem>>, vector<1x272x42xbf16>
    %16 = vector.shape_cast %15 : vector<1x272x42xbf16> to vector<272x42xbf16>
    %c1 = arith.constant 1 : index
    %c0_7 = arith.constant 0 : index
    %c0_8 = arith.constant 0 : index
    %17 = vector.load %arg3[%c1, %c0_7, %c0_8] : memref<4x42x128xbf16, #tpu.memory_space<vmem>>, vector<1x42x128xbf16>
    %18 = vector.shape_cast %17 : vector<1x42x128xbf16> to vector<42x128xbf16>
    %cst_9 = arith.constant dense<0.000000e+00> : vector<272x128xf32>
    %19 = tpu.matmul %16, %18, %cst_9 {dimension_numbers = #tpu.dot_dimension_numbers<[1], [0], [0], [1], [0, 0, 1, 1], [], []>} : vector<272x42xbf16>, vector<42x128xbf16>, vector<272x128xf32> -> vector<272x128xf32>
    %20 = arith.addf %10, %19 : vector<272x128xf32>
    %c2_i32_10 = arith.constant 2 : i32
    %21 = arith.addi %1, %c2_i32_10 : i32
    %c16_i32_11 = arith.constant 16 : i32
    %22 = arith.muli %21, %c16_i32_11 : i32
    %23 = tpu.assume_multiple %22, 8 : i32
    %c0_12 = arith.constant 0 : index
    %24 = arith.index_cast %23 : i32 to index
    %c0_13 = arith.constant 0 : index
    %25 = vector.load %arg2[%c0_12, %24, %c0_13] : memref<1x320x42xbf16, #tpu.memory_space<vmem>>, vector<1x272x42xbf16>
    %26 = vector.shape_cast %25 : vector<1x272x42xbf16> to vector<272x42xbf16>
    %c2 = arith.constant 2 : index
    %c0_14 = arith.constant 0 : index
    %c0_15 = arith.constant 0 : index
    %27 = vector.load %arg3[%c2, %c0_14, %c0_15] : memref<4x42x128xbf16, #tpu.memory_space<vmem>>, vector<1x42x128xbf16>
    %28 = vector.shape_cast %27 : vector<1x42x128xbf16> to vector<42x128xbf16>
    %cst_16 = arith.constant dense<0.000000e+00> : vector<272x128xf32>
    %29 = tpu.matmul %26, %28, %cst_16 {dimension_numbers = #tpu.dot_dimension_numbers<[1], [0], [0], [1], [0, 0, 1, 1], [], []>} : vector<272x42xbf16>, vector<42x128xbf16>, vector<272x128xf32> -> vector<272x128xf32>
    %30 = arith.addf %20, %29 : vector<272x128xf32>
    %c3_i32 = arith.constant 3 : i32
    %31 = arith.addi %1, %c3_i32 : i32
    %c16_i32_17 = arith.constant 16 : i32
    %32 = arith.muli %31, %c16_i32_17 : i32
    %33 = tpu.assume_multiple %32, 8 : i32
    %c0_18 = arith.constant 0 : index
    %34 = arith.index_cast %33 : i32 to index
    %c0_19 = arith.constant 0 : index
    %35 = vector.load %arg2[%c0_18, %34, %c0_19] : memref<1x320x42xbf16, #tpu.memory_space<vmem>>, vector<1x272x42xbf16>
    %36 = vector.shape_cast %35 : vector<1x272x42xbf16> to vector<272x42xbf16>
    %c3 = arith.constant 3 : index
    %c0_20 = arith.constant 0 : index
    %c0_21 = arith.constant 0 : index
    %37 = vector.load %arg3[%c3, %c0_20, %c0_21] : memref<4x42x128xbf16, #tpu.memory_space<vmem>>, vector<1x42x128xbf16>
    %38 = vector.shape_cast %37 : vector<1x42x128xbf16> to vector<42x128xbf16>
    %cst_22 = arith.constant dense<0.000000e+00> : vector<272x128xf32>
    %39 = tpu.matmul %36, %38, %cst_22 {dimension_numbers = #tpu.dot_dimension_numbers<[1], [0], [0], [1], [0, 0, 1, 1], [], []>} : vector<272x42xbf16>, vector<42x128xbf16>, vector<272x128xf32> -> vector<272x128xf32>
    %40 = arith.addf %30, %39 : vector<272x128xf32>
    %c0_23 = arith.constant 0 : index
    %c0_24 = arith.constant 0 : index
    %41 = vector.load %arg4[%c0_23, %c0_24] : memref<1x128xf32, #tpu.memory_space<vmem>>, vector<1x128xf32>
    %42 = vector.broadcast %41 : vector<1x128xf32> to vector<272x128xf32>
    %43 = arith.mulf %40, %42 : vector<272x128xf32>
    %c0_25 = arith.constant 0 : index
    %c0_26 = arith.constant 0 : index
    %44 = vector.load %arg5[%c0_25, %c0_26] : memref<1x128xf32, #tpu.memory_space<vmem>>, vector<1x128xf32>
    %45 = vector.broadcast %44 : vector<1x128xf32> to vector<272x128xf32>
    %46 = arith.addf %43, %45 : vector<272x128xf32>
    %cst_27 = arith.constant 0.000000e+00 : f32
    %47 = vector.broadcast %cst_27 : f32 to vector<272x128xf32>
    %48 = arith.maximumf %46, %47 : vector<272x128xf32>
    %cst_28 = arith.constant 0.000000e+00 : f32
    %49 = vector.broadcast %cst_28 : f32 to vector<17x8x128xf32>
    %c0_29 = arith.constant 0 : index
    %c0_30 = arith.constant 0 : index
    %c0_31 = arith.constant 0 : index
    %50 = vector.load %arg7[%c0_29, %c0_30, %c0_31] : memref<17x24x128xf32, #tpu.memory_space<vmem>>, vector<17x8x128xf32>
    tpu.vector_store %arg7[%c0_29, %c0_30, %c0_31], %49 {strides = array<i32>} : memref<17x24x128xf32, #tpu.memory_space<vmem>>, vector<17x8x128xf32>,
    %51 = vector.shape_cast %48 : vector<272x128xf32> to vector<17x16x128xf32>
    %c0_32 = arith.constant 0 : index
    %c8 = arith.constant 8 : index
    %c0_33 = arith.constant 0 : index
    %52 = vector.load %arg7[%c0_32, %c8, %c0_33] : memref<17x24x128xf32, #tpu.memory_space<vmem>>, vector<17x16x128xf32>
    tpu.vector_store %arg7[%c0_32, %c8, %c0_33], %51 {strides = array<i32>} : memref<17x24x128xf32, #tpu.memory_space<vmem>>, vector<17x16x128xf32>,
    %c0_i32_34 = arith.constant 0 : i32
    %53 = arith.cmpi eq, %arg1, %c0_i32_34 : i32
    %54 = arith.extui %53 : i1 to i32
    %c0_i32_35 = arith.constant 0 : i32
    %55 = arith.cmpi ne, %54, %c0_i32_35 : i32
    scf.if %55 {
      %cst_59 = arith.constant 0.000000e+00 : f32
      %71 = vector.broadcast %cst_59 : f32 to vector<24x128xf32>
      %c0_60 = arith.constant 0 : index
      %c0_61 = arith.constant 0 : index
      %c0_62 = arith.constant 0 : index
      %72 = vector.load %arg7[%c0_60, %c0_61, %c0_62] : memref<17x24x128xf32, #tpu.memory_space<vmem>>, vector<1x24x128xf32>
      %73 = vector.shape_cast %72 : vector<1x24x128xf32> to vector<24x128xf32>
      %74 = vector.shape_cast %71 : vector<24x128xf32> to vector<1x24x128xf32>
      tpu.vector_store %arg7[%c0_60, %c0_61, %c0_62], %74 {strides = array<i32>} : memref<17x24x128xf32, #tpu.memory_space<vmem>>, vector<1x24x128xf32>,
    } else {
    }
    %c0_36 = arith.constant 0 : index
    %c7 = arith.constant 7 : index
    %c0_37 = arith.constant 0 : index
    %56 = tpu.strided_load %arg7[%c0_36, %c7, %c0_37] {strides = array<i32: 1, 2, 1>} : memref<17x24x128xf32, #tpu.memory_space<vmem>>, vector<17x8x128xf32>
    %c0_38 = arith.constant 0 : index
    %c8_39 = arith.constant 8 : index
    %c0_40 = arith.constant 0 : index
    %57 = tpu.strided_load %arg7[%c0_38, %c8_39, %c0_40] {strides = array<i32: 1, 2, 1>} : memref<17x24x128xf32, #tpu.memory_space<vmem>>, vector<17x8x128xf32>
    %c0_41 = arith.constant 0 : index
    %c9 = arith.constant 9 : index
    %c0_42 = arith.constant 0 : index
    %58 = tpu.strided_load %arg7[%c0_41, %c9, %c0_42] {strides = array<i32: 1, 2, 1>} : memref<17x24x128xf32, #tpu.memory_space<vmem>>, vector<17x8x128xf32>
    %59 = arith.maximumf %56, %58 : vector<17x8x128xf32>
    %60 = arith.maximumf %57, %59 : vector<17x8x128xf32>
    %c0_43 = arith.constant 0 : index
    %c0_44 = arith.constant 0 : index
    %c0_45 = arith.constant 0 : index
    %61 = vector.load %arg8[%c0_43, %c0_44, %c0_45] : memref<17x8x128xf32, #tpu.memory_space<vmem>>, vector<17x8x128xf32>
    tpu.vector_store %arg8[%c0_43, %c0_44, %c0_45], %60 {strides = array<i32>} : memref<17x8x128xf32, #tpu.memory_space<vmem>>, vector<17x8x128xf32>,
    %c0_46 = arith.constant 0 : index
    %c0_47 = arith.constant 0 : index
    %c0_48 = arith.constant 0 : index
    %62 = tpu.strided_load %arg8[%c0_46, %c0_47, %c0_48] {strides = array<i32: 2, 1, 1>} : memref<17x8x128xf32, #tpu.memory_space<vmem>>, vector<8x8x128xf32>
    %c1_49 = arith.constant 1 : index
    %c0_50 = arith.constant 0 : index
    %c0_51 = arith.constant 0 : index
    %63 = tpu.strided_load %arg8[%c1_49, %c0_50, %c0_51] {strides = array<i32: 2, 1, 1>} : memref<17x8x128xf32, #tpu.memory_space<vmem>>, vector<8x8x128xf32>
    %c2_52 = arith.constant 2 : index
    %c0_53 = arith.constant 0 : index
    %c0_54 = arith.constant 0 : index
    %64 = tpu.strided_load %arg8[%c2_52, %c0_53, %c0_54] {strides = array<i32: 2, 1, 1>} : memref<17x8x128xf32, #tpu.memory_space<vmem>>, vector<8x8x128xf32>
    %65 = arith.maximumf %63, %64 : vector<8x8x128xf32>
    %66 = arith.maximumf %62, %65 : vector<8x8x128xf32>
    %67 = arith.truncf %66 : vector<8x8x128xf32> to vector<8x8x128xbf16>
    %c0_55 = arith.constant 0 : index
    %c0_56 = arith.constant 0 : index
    %c0_57 = arith.constant 0 : index
    %c0_58 = arith.constant 0 : index
    %68 = vector.load %arg6[%c0_55, %c0_56, %c0_57, %c0_58] : memref<1x8x8x128xbf16, #tpu.memory_space<vmem>>, vector<1x8x8x128xbf16>
    %69 = vector.shape_cast %68 : vector<1x8x8x128xbf16> to vector<8x8x128xbf16>
    %70 = vector.shape_cast %67 : vector<8x8x128xbf16> to vector<1x8x8x128xbf16>
    tpu.vector_store %arg6[%c0_55, %c0_56, %c0_57, %c0_58], %70 {strides = array<i32>} : memref<1x8x8x128xbf16, #tpu.memory_space<vmem>>, vector<1x8x8x128xbf16>,
    return
  }
  func.func @transform_0(%arg0: i32, %arg1: i32) -> (i32, i32, i32) {
    %c0_i32 = arith.constant 0 : i32
    %c0_i32_0 = arith.constant 0 : i32
    %c0_i32_1 = arith.constant 0 : i32
    return %arg0, %c0_i32, %c0_i32_0 : i32, i32, i32
  }
  func.func @transform_1(%arg0: i32, %arg1: i32) -> (i32, i32, i32) {
    %c0_i32 = arith.constant 0 : i32
    %c0_i32_0 = arith.constant 0 : i32
    %c0_i32_1 = arith.constant 0 : i32
    %c0_i32_2 = arith.constant 0 : i32
    return %c0_i32, %c0_i32_0, %c0_i32_1 : i32, i32, i32
  }
  func.func @transform_2(%arg0: i32, %arg1: i32) -> (i32, i32) {
    %c0_i32 = arith.constant 0 : i32
    %c0_i32_0 = arith.constant 0 : i32
    %c0_i32_1 = arith.constant 0 : i32
    return %c0_i32, %c0_i32_0 : i32, i32
  }
  func.func @transform_3(%arg0: i32, %arg1: i32) -> (i32, i32) {
    %c0_i32 = arith.constant 0 : i32
    %c0_i32_0 = arith.constant 0 : i32
    %c0_i32_1 = arith.constant 0 : i32
    return %c0_i32, %c0_i32_0 : i32, i32
  }
  func.func @transform_4(%arg0: i32, %arg1: i32) -> (i32, i32, i32, i32) {
    %c0_i32 = arith.constant 0 : i32
    %c0_i32_0 = arith.constant 0 : i32
    %c0_i32_1 = arith.constant 0 : i32
    return %arg0, %arg1, %c0_i32, %c0_i32_0 : i32, i32, i32, i32
  }
}

</mosaic_0001>

<llo_original>
// kernel: prefix_resnet_forward.1
$region0: #{prefix_resnet_forward.1}
  #allocation0 [shape = 'u32[]', space=smem, size = 0x4, offset = 0x4, fixed_abs, tag = 'smem constant byte address 0x4 - core index']
  #allocation1 [shape = 'u32[144,128]{1,0:T(1,128)}', space=vmem, size = 0x12000, scoped, tag = 'internal scratch']
  #allocation2 [shape = 'f32[17,24,128]{2,1,0:T(8,128)}', space=vmem, size = 0x33000, scoped, tag = 'scratch operand']
  #allocation3 [shape = 'f32[17,8,128]{2,1,0:T(8,128)}', space=vmem, size = 0x11000, scoped, tag = 'scratch operand']
  %s0 = inlined_call_operand.hbm [shape: bf16[2,320,42], index: 0, kind: input, shape index: {}]
  %s1 = inlined_call_operand.hbm [shape: bf16[4,42,128], index: 1, kind: input, shape index: {}]
  %s2 = inlined_call_operand.hbm [shape: f32[1,128], index: 2, kind: input, shape index: {}]
  %s3 = inlined_call_operand.hbm [shape: f32[1,128], index: 3, kind: input, shape index: {}]
  %s4 = inlined_call_operand.hbm [shape: bf16[2,8,8,128], index: 4, kind: output, shape index: {}]
  %s5 = sld [smem:[#allocation0]]
  $region69: #{prefix_resnet_forward.1} parent=0
    _
  %s7 = ssub.s32 1, %s5
  %s8 = scalar_select 0, %s7, %s5
  $region1: #{prefix_resnet_forward.1} parent=0
    #allocation4 [shape = 'u8[163840]{0}', space=vmem, size = 0x28000, scoped, tag = 'input window, operand 0']
    #allocation5 [shape = 's32[2]{0}', space=sflag, size = 0x8, scoped, tag = 'scoped memory for prefix_resnet_forward.1']
    #allocation6 [shape = 's32[2]{0}', space=sflag, size = 0x8, scoped, tag = 'scoped memory for prefix_resnet_forward.1']
    #allocation7 [shape = 'u8[49152]{0}', space=vmem, size = 0xc000, scoped, tag = 'input window, operand 1, single buffered']
    #allocation8 [shape = 's32[1]{0}', space=sflag, size = 0x4, scoped, tag = 'scoped memory for prefix_resnet_forward.1']
    #allocation9 [shape = 'u8[512]{0}', space=vmem, size = 0x400, scoped, tag = 'input window, operand 2, single buffered']
    #allocation10 [shape = 'u8[512]{0}', space=vmem, size = 0x400, scoped, tag = 'input window, operand 3, single buffered']
    #allocation11 [shape = 's32[1]{0}', space=sflag, size = 0x4, scoped, tag = 'scoped memory for prefix_resnet_forward.1']
    #allocation12 [shape = 'u8[32768]{0}', space=vmem, size = 0x8000, scoped, tag = 'output window, operand 0']
    %9 = vsyncpa [#allocation5], 0
    %s10 = scalar_lea.sflag [#allocation5], 1
    %11 = vsyncpa %s10, 0
    %12 = vsyncpa [#allocation8], 0
    %13 = vsyncpa [#allocation11], 0
    %14 = vsyncpa [#allocation6], 0
    %s15 = scalar_lea.sflag [#allocation6], 1
    %16 = vsyncpa %s15, 0
    loop: start=0, step=1, limit=4
    $region2: #{prefix_resnet_forward.1} parent=1 // loop_pre_header
      _
    $region3: #{prefix_resnet_forward.1} parent=1 // loop_header
      %s18 = sphi 0, %s22
      %p19 = scmp.ge.s32.totalorder %s18, 4
      %s25 = sphi 0, %s37
      %s26 = sphi 0, %s33
      %s27 = sphi 0, %s25
      %s28 = sphi 0, %s26
      %s29 = sphi 0, %s27
      %s30 = sphi 0, %s28
      %s40 = sphi 0, %s42
      %s43 = sphi 0, %s40
      %s44 = sphi 0, %s43
      %s60 = sphi 0, %s44
      %s64 = sphi 0, %s64
      %s66 = sphi 0, %s64
      %s67 = sphi 0, %s66
      %s81 = sphi 0, %s67
      %s85 = sphi 0, %s85
      %s87 = sphi 0, %s85
      %s88 = sphi 0, %s87
      %s102 = sphi 0, %s88
      %s106 = sphi 0, %s106
      %s108 = sphi 0, %s106
      %s109 = sphi 0, %s108
      %s123 = sphi 0, %s109
      %s131 = sphi 0, %s133
      %s134 = sphi 0, %s131
      %s135 = sphi 0, %s134
      %s151 = sphi 0, %s135
    $region4: #{prefix_resnet_forward.1} parent=1 // loop_header_branch
      %21 = sbr.rel (%p19) target = $region8
    $region5: #{prefix_resnet_forward.1} parent=1 // loop_body
      %s23 = ssub.s32 %s18, 1
      %s24 = ssub.s32 %s18, 2
      %s31 = sadd.s32 1, %s26
      %p32 = scmp.ge.s32.totalorder %s31, 1
      %s33 = scalar_select %p32, 0, %s31
      %s34 = sadd.s32 1, %s25
      %s35 = scalar_select %p32, %s34, %s25
      %p36 = scmp.ge.s32.totalorder %s35, 2
      %s37 = scalar_select %p36, 0, %s35
      %s38 = ssub.s32 %s25, %s37
      %p39 = scmp.eq.s32.totalorder %s38, 0
      %s41 = sadd.s32 %s40, 1
      %s42 = scalar_select %p39, %s40, %s41
      %p45 = pneg %p39
      %p46 = scmp.eq.s32.totalorder %s18, 1
      %p47 = por %p45, %p46
      %p48 = scmp.ne.s32.totalorder %s40, %s43
      %p49 = scmp.eq.s32.totalorder %s18, 0
      %p50 = por %p48, %p49
      %p51 = scmp.ne.s32.totalorder %s40, %s43
      %p52 = scmp.eq.s32.totalorder %s23, 1
      %p53 = por %p51, %p52
      %p54 = scmp.ne.s32.totalorder %s43, %s44
      %p55 = scmp.eq.s32.totalorder %s23, 0
      %p56 = por %p54, %p55
      %p57 = scmp.ne.s32.totalorder %s43, %s44
      %p58 = scmp.eq.s32.totalorder %s24, 1
      %p59 = por %p57, %p58
      %p61 = scmp.ne.s32.totalorder %s44, %s60
      %p62 = scmp.eq.s32.totalorder %s24, 0
      %p63 = por %p61, %p62
      %s65 = sadd.s32 %s64, 1
      %p68 = scmp.eq.s32.totalorder %s18, 1
      %p69 = scmp.ne.s32.totalorder %s64, %s66
      %p70 = scmp.eq.s32.totalorder %s18, 0
      %p71 = por %p69, %p70
      %p72 = scmp.ne.s32.totalorder %s64, %s66
      %p73 = scmp.eq.s32.totalorder %s23, 1
      %p74 = por %p72, %p73
      %p75 = scmp.ne.s32.totalorder %s66, %s67
      %p76 = scmp.eq.s32.totalorder %s23, 0
      %p77 = por %p75, %p76
      %p78 = scmp.ne.s32.totalorder %s66, %s67
      %p79 = scmp.eq.s32.totalorder %s24, 1
      %p80 = por %p78, %p79
      %p82 = scmp.ne.s32.totalorder %s67, %s81
      %p83 = scmp.eq.s32.totalorder %s24, 0
      %p84 = por %p82, %p83
      %s86 = sadd.s32 %s85, 1
      %p89 = scmp.eq.s32.totalorder %s18, 1
      %p90 = scmp.ne.s32.totalorder %s85, %s87
      %p91 = scmp.eq.s32.totalorder %s18, 0
      %p92 = por %p90, %p91
      %p93 = scmp.ne.s32.totalorder %s85, %s87
      %p94 = scmp.eq.s32.totalorder %s23, 1
      %p95 = por %p93, %p94
      %p96 = scmp.ne.s32.totalorder %s87, %s88
      %p97 = scmp.eq.s32.totalorder %s23, 0
      %p98 = por %p96, %p97
      %p99 = scmp.ne.s32.totalorder %s87, %s88
      %p100 = scmp.eq.s32.totalorder %s24, 1
      %p101 = por %p99, %p100
      %p103 = scmp.ne.s32.totalorder %s88, %s102
      %p104 = scmp.eq.s32.totalorder %s24, 0
      %p105 = por %p103, %p104
      %s107 = sadd.s32 %s106, 1
      %p110 = scmp.eq.s32.totalorder %s18, 1
      %p111 = scmp.ne.s32.totalorder %s106, %s108
      %p112 = scmp.eq.s32.totalorder %s18, 0
      %p113 = por %p111, %p112
      %p114 = scmp.ne.s32.totalorder %s106, %s108
      %p115 = scmp.eq.s32.totalorder %s23, 1
      %p116 = por %p114, %p115
      %p117 = scmp.ne.s32.totalorder %s108, %s109
      %p118 = scmp.eq.s32.totalorder %s23, 0
      %p119 = por %p117, %p118
      %p120 = scmp.ne.s32.totalorder %s108, %s109
      %p121 = scmp.eq.s32.totalorder %s24, 1
      %p122 = por %p120, %p121
      %p124 = scmp.ne.s32.totalorder %s109, %s123
      %p125 = scmp.eq.s32.totalorder %s24, 0
      %p126 = por %p124, %p125
      %s127 = ssub.s32 %s25, %s37
      %s128 = ssub.s32 %s26, %s33
      %s129 = sor.u32 %s127, %s128
      %p130 = scmp.eq.s32.totalorder %s129, 0
      %s132 = sadd.s32 %s131, 1
      %s133 = scalar_select %p130, %s131, %s132
      %p136 = pneg %p130
      %p137 = scmp.eq.s32.totalorder %s18, 1
      %p138 = por %p136, %p137
      %p139 = scmp.ne.s32.totalorder %s131, %s134
      %p140 = scmp.eq.s32.totalorder %s18, 0
      %p141 = por %p139, %p140
      %p142 = scmp.ne.s32.totalorder %s131, %s134
      %p143 = scmp.eq.s32.totalorder %s23, 1
      %p144 = por %p142, %p143
      %p145 = scmp.ne.s32.totalorder %s134, %s135
      %p146 = scmp.eq.s32.totalorder %s23, 0
      %p147 = por %p145, %p146
      %p148 = scmp.ne.s32.totalorder %s134, %s135
      %p149 = scmp.eq.s32.totalorder %s24, 1
      %p150 = por %p148, %p149
      %p152 = scmp.ne.s32.totalorder %s135, %s151
      %p153 = scmp.eq.s32.totalorder %s24, 0
      %p154 = por %p152, %p153
      %p155 = scmp.le.s32.totalorder 1, %s18
      %p156 = scmp.lt.s32.totalorder %s18, 3
      %p157 = pnand %p155, %p156
      %p158 = pneg %p157
      // Predicated region
      $region9: #{prefix_resnet_forward.1} parent=5 // pred_check
        _
      $region10: #{prefix_resnet_forward.1} parent=5 // pred_check_branch
        %160 = sbr.rel (%p157) target = $region12
      $region11: #{prefix_resnet_forward.1} parent=5 // pred_region
        %s161 = ssub.s32 %s18, 1
        // Predicated region
        $region13: #{prefix_resnet_forward.1} parent=11 // pred_check
          %p162 = pneg %p77
        $region14: #{prefix_resnet_forward.1} parent=11 // pred_check_branch
          %164 = sbr.rel (%p162) target = $region16
        $region15: #{prefix_resnet_forward.1} parent=11 // pred_region
          %s166 = ssub.s32 1536, 1536
          %167 = vsyncadd [#allocation8], %s166
          %s168 = sshll.u32 [#allocation7], 4
          %s169 = int_to_ptr.vmem [resolvable:$true] %s168
          %174 = dma.hbm_to_vmem [thread:$0]  %s1, 1536, %s169, [#allocation8], 64, 64, 4
        $region16: #{prefix_resnet_forward.1} parent=11 // pred_fallthru
          _
        // Predicated region
        $region17: #{prefix_resnet_forward.1} parent=11 // pred_check
          %p175 = pneg %p98
        $region18: #{prefix_resnet_forward.1} parent=11 // pred_check_branch
          %177 = sbr.rel (%p175) target = $region20
        $region19: #{prefix_resnet_forward.1} parent=11 // pred_region
          %s179 = ssub.s32 16, 16
          %180 = vsyncadd [#allocation8], %s179
          %s182 = sshll.u32 [#allocation9], 4
          %s183 = int_to_ptr.vmem [resolvable:$true] %s182
          %185 = dma.hbm_to_vmem [thread:$0]  %s2, 16, %s183, [#allocation8]
        $region20: #{prefix_resnet_forward.1} parent=11 // pred_fallthru
          _
        // Predicated region
        $region21: #{prefix_resnet_forward.1} parent=11 // pred_check
          %p186 = pneg %p119
        $region22: #{prefix_resnet_forward.1} parent=11 // pred_check_branch
          %188 = sbr.rel (%p186) target = $region24
        $region23: #{prefix_resnet_forward.1} parent=11 // pred_region
          %s190 = ssub.s32 16, 16
          %191 = vsyncadd [#allocation11], %s190
          %s193 = sshll.u32 [#allocation10], 4
          %s194 = int_to_ptr.vmem [resolvable:$true] %s193
          %196 = dma.hbm_to_vmem [thread:$0]  %s3, 16, %s194, [#allocation11]
        $region24: #{prefix_resnet_forward.1} parent=11 // pred_fallthru
          _
      $region12: #{prefix_resnet_forward.1} parent=5 // pred_fallthru
        _
      %p197 = scmp.lt.s32.totalorder %s18, 2
      // Predicated region
      $region25: #{prefix_resnet_forward.1} parent=5 // pred_check
        %p198 = pneg %p197
      $region26: #{prefix_resnet_forward.1} parent=5 // pred_check_branch
        %200 = sbr.rel (%p198) target = $region28
      $region27: #{prefix_resnet_forward.1} parent=5 // pred_region
        // Predicated region
        $region29: #{prefix_resnet_forward.1} parent=27 // pred_check
          %p201 = pneg %p50
        $region30: #{prefix_resnet_forward.1} parent=27 // pred_check_branch
          %203 = sbr.rel (%p201) target = $region32
        $region31: #{prefix_resnet_forward.1} parent=27 // pred_region
          %s204 = sand.u32 %s40, 1
          %s205 = scalar_lea.sflag [#allocation5], %s204
          %s206 = sand.u32 %s40, 1
          %s207 = smul.addr %s206, 160
          %s208 = scalar_lea.vmem [#allocation4], %s207
          %s210 = ssub.s32 2560, 2560
          %211 = vsyncadd %s205, %s210
          %s212 = smul.addr %s25, 40
          %s213 = smul.addr %s212, 64
          %s214 = scalar_lea.hbm %s0, %s213
          %s215 = sshll.u32 %s208, 4
          %s216 = int_to_ptr.vmem [resolvable:$true] %s215
          %221 = dma.hbm_to_vmem [thread:$0]  %s214, 2560, %s216, %s205, 64, 64, 4
        $region32: #{prefix_resnet_forward.1} parent=27 // pred_fallthru
          _
      $region28: #{prefix_resnet_forward.1} parent=5 // pred_fallthru
        _
      %p222 = scmp.le.s32.totalorder 1, %s18
      %p223 = scmp.lt.s32.totalorder %s18, 3
      %p224 = pnand %p222, %p223
      %p225 = pneg %p224
      // Predicated region
      $region33: #{prefix_resnet_forward.1} parent=5 // pred_check
        _
      $region34: #{prefix_resnet_forward.1} parent=5 // pred_check_branch
        %227 = sbr.rel (%p224) target = $region36
      $region35: #{prefix_resnet_forward.1} parent=5 // pred_region
        %s228 = ssub.s32 %s18, 1
        %s229 = sand.u32 %s43, 1
        %s230 = scalar_lea.sflag [#allocation5], %s229
        %s231 = sand.u32 %s43, 1
        %s232 = smul.addr %s231, 160
        %s233 = scalar_lea.vmem [#allocation4], %s232
        // Predicated region
        $region37: #{prefix_resnet_forward.1} parent=35 // pred_check
          %p234 = pneg %p56
        $region38: #{prefix_resnet_forward.1} parent=35 // pred_check_branch
          %236 = sbr.rel (%p234) target = $region40
        $region39: #{prefix_resnet_forward.1} parent=35 // pred_region
          %237 = dma.done %s230, 2560
        $region40: #{prefix_resnet_forward.1} parent=35 // pred_fallthru
          _
        // Predicated region
        $region41: #{prefix_resnet_forward.1} parent=35 // pred_check
          %p238 = pneg %p77
        $region42: #{prefix_resnet_forward.1} parent=35 // pred_check_branch
          %240 = sbr.rel (%p238) target = $region44
        $region43: #{prefix_resnet_forward.1} parent=35 // pred_region
          %241 = dma.done [#allocation8], 1536
        $region44: #{prefix_resnet_forward.1} parent=35 // pred_fallthru
          _
        // Predicated region
        $region45: #{prefix_resnet_forward.1} parent=35 // pred_check
          %p242 = pneg %p98
        $region46: #{prefix_resnet_forward.1} parent=35 // pred_check_branch
          %244 = sbr.rel (%p242) target = $region48
        $region47: #{prefix_resnet_forward.1} parent=35 // pred_region
          %245 = dma.done [#allocation8], 16
        $region48: #{prefix_resnet_forward.1} parent=35 // pred_fallthru
          _
        // Predicated region
        $region49: #{prefix_resnet_forward.1} parent=35 // pred_check
          %p246 = pneg %p119
        $region50: #{prefix_resnet_forward.1} parent=35 // pred_check_branch
          %248 = sbr.rel (%p246) target = $region52
        $region51: #{prefix_resnet_forward.1} parent=35 // pred_region
          %249 = dma.done [#allocation11], 16
        $region52: #{prefix_resnet_forward.1} parent=35 // pred_fallthru
          _
        %s250 = sand.u32 %s43, 1
        %s251 = scalar_lea.sflag [#allocation5], %s250
        %s252 = sand.u32 %s43, 1
        %s253 = smul.addr %s252, 160
        %s254 = scalar_lea.vmem [#allocation4], %s253
        %p255 = pneg %p56
        %p256 = pneg %p53
        %p257 = pneg %p77
        %p258 = pneg %p74
        %p259 = pneg %p98
        %p260 = pneg %p95
        %p261 = pneg %p119
        %p262 = pneg %p116
        %p263 = pneg %p147
        %p264 = pneg %p144
        %s265 = sand.u32 %s134, 1
        %s266 = scalar_lea.sflag [#allocation6], %s265
        %s267 = sand.u32 %s134, 1
        %s268 = smul.addr %s267, 32
        %s269 = scalar_lea.vmem [#allocation12], %s268
        %s270 = smul.u32 8, %s28
        %s272 = smul.u32 %s28, 16
        %s273 = smul.u32 %s28, 256
        %s274 = sshra.s32 %s273, 3
        %s275 = sand.u32 %s273, 7
        %s276 = smul.addr %s274, 4
        %s277 = scalar_lea.vmem %s233, %s276 [#allocation4]
        %v278 = vld [vmem:[%s277] sm:$0xf]
        %v279 = vld [vmem:[%s277 + $0x4] sm:$0xf]
        %v280 = vld [vmem:[%s277 + $0x8] sm:$0xf]
        %v281 = vld [vmem:[%s277 + $0xc] sm:$0xf]
        %v282 = vld [vmem:[%s277 + $0x10] sm:$0xf]
        %v283 = vld [vmem:[%s277 + $0x14] sm:$0xf]
        %v284 = vld [vmem:[%s277 + $0x18] sm:$0xf]
        %v285 = vld [vmem:[%s277 + $0x1c] sm:$0xf]
        %v286 = vld [vmem:[%s277 + $0x20] sm:$0xf]
        %v287 = vld [vmem:[%s277 + $0x24] sm:$0xf]
        %v288 = vld [vmem:[%s277 + $0x28] sm:$0xf]
        %v289 = vld [vmem:[%s277 + $0x2c] sm:$0xf]
        %v290 = vld [vmem:[%s277 + $0x30] sm:$0xf]
        %v291 = vld [vmem:[%s277 + $0x34] sm:$0xf]
        %v292 = vld [vmem:[%s277 + $0x38] sm:$0xf]
        %v293 = vld [vmem:[%s277 + $0x3c] sm:$0xf]
        %v294 = vld [vmem:[%s277 + $0x40] sm:$0xf]
        %v295 = vld [vmem:[%s277 + $0x44] sm:$0xf]
        %v296 = vld [vmem:[%s277 + $0x48] sm:$0xf]
        %v297 = vld [vmem:[%s277 + $0x4c] sm:$0xf]
        %v298 = vld [vmem:[%s277 + $0x50] sm:$0xf]
        %v299 = vld [vmem:[%s277 + $0x54] sm:$0xf]
        %v300 = vld [vmem:[%s277 + $0x58] sm:$0xf]
        %v301 = vld [vmem:[%s277 + $0x5c] sm:$0xf]
        %v302 = vld [vmem:[%s277 + $0x60] sm:$0xf]
        %v303 = vld [vmem:[%s277 + $0x64] sm:$0xf]
        %v304 = vld [vmem:[%s277 + $0x68] sm:$0xf]
        %v305 = vld [vmem:[%s277 + $0x6c] sm:$0xf]
        %v306 = vld [vmem:[%s277 + $0x70] sm:$0xf]
        %v307 = vld [vmem:[%s277 + $0x74] sm:$0xf]
        %v308 = vld [vmem:[%s277 + $0x78] sm:$0xf]
        %v309 = vld [vmem:[%s277 + $0x7c] sm:$0xf]
        %v310 = vld [vmem:[%s277 + $0x80] sm:$0xf]
        %v311 = vld [vmem:[%s277 + $0x84] sm:$0xf]
        %v312 = vld [vmem:[#allocation7] sm:$0xf]
        %v313 = vld [vmem:[#allocation7 + $0x4] sm:$0xf]
        %v314 = vld [vmem:[#allocation7 + $0x8] sm:$0xf]
        %v315 = vld [vmem:[#allocation7 + $0xc] sm:$0xf]
        %v316 = vld [vmem:[#allocation7 + $0x10] sm:$0xf]
        %v317 = vld [vmem:[#allocation7 + $0x14] sm:$0x1]
        %s318 = sadd.s32 %s272, 1
        %s319 = smul.u32 %s318, 16
        %s320 = sshra.s32 %s319, 3
        %s321 = sand.u32 %s319, 7
        %s322 = smul.addr %s320, 4
        %s323 = scalar_lea.vmem %s233, %s322 [#allocation4]
        %v324 = vld [vmem:[%s323] sm:$0xf]
        %v325 = vld [vmem:[%s323 + $0x4] sm:$0xf]
        %v326 = vld [vmem:[%s323 + $0x8] sm:$0xf]
        %v327 = vld [vmem:[%s323 + $0xc] sm:$0xf]
        %v328 = vld [vmem:[%s323 + $0x10] sm:$0xf]
        %v329 = vld [vmem:[%s323 + $0x14] sm:$0xf]
        %v330 = vld [vmem:[%s323 + $0x18] sm:$0xf]
        %v331 = vld [vmem:[%s323 + $0x1c] sm:$0xf]
        %v332 = vld [vmem:[%s323 + $0x20] sm:$0xf]
        %v333 = vld [vmem:[%s323 + $0x24] sm:$0xf]
        %v334 = vld [vmem:[%s323 + $0x28] sm:$0xf]
        %v335 = vld [vmem:[%s323 + $0x2c] sm:$0xf]
        %v336 = vld [vmem:[%s323 + $0x30] sm:$0xf]
        %v337 = vld [vmem:[%s323 + $0x34] sm:$0xf]
        %v338 = vld [vmem:[%s323 + $0x38] sm:$0xf]
        %v339 = vld [vmem:[%s323 + $0x3c] sm:$0xf]
        %v340 = vld [vmem:[%s323 + $0x40] sm:$0xf]
        %v341 = vld [vmem:[%s323 + $0x44] sm:$0xf]
        %v342 = vld [vmem:[%s323 + $0x48] sm:$0xf]
        %v343 = vld [vmem:[%s323 + $0x4c] sm:$0xf]
        %v344 = vld [vmem:[%s323 + $0x50] sm:$0xf]
        %v345 = vld [vmem:[%s323 + $0x54] sm:$0xf]
        %v346 = vld [vmem:[%s323 + $0x58] sm:$0xf]
        %v347 = vld [vmem:[%s323 + $0x5c] sm:$0xf]
        %v348 = vld [vmem:[%s323 + $0x60] sm:$0xf]
        %v349 = vld [vmem:[%s323 + $0x64] sm:$0xf]
        %v350 = vld [vmem:[%s323 + $0x68] sm:$0xf]
        %v351 = vld [vmem:[%s323 + $0x6c] sm:$0xf]
        %v352 = vld [vmem:[%s323 + $0x70] sm:$0xf]
        %v353 = vld [vmem:[%s323 + $0x74] sm:$0xf]
        %v354 = vld [vmem:[%s323 + $0x78] sm:$0xf]
        %v355 = vld [vmem:[%s323 + $0x7c] sm:$0xf]
        %v356 = vld [vmem:[%s323 + $0x80] sm:$0xf]
        %v357 = vld [vmem:[%s323 + $0x84] sm:$0xf]
        %s358 = scalar_lea.vmem [#allocation7], 24
        %v359 = vld [vmem:[%s358] sm:$0xf]
        %v360 = vld [vmem:[%s358 + $0x4] sm:$0xf]
        %v361 = vld [vmem:[%s358 + $0x8] sm:$0xf]
        %v362 = vld [vmem:[%s358 + $0xc] sm:$0xf]
        %v363 = vld [vmem:[%s358 + $0x10] sm:$0xf]
        %v364 = vld [vmem:[%s358 + $0x14] sm:$0x1]
        %v399 = vunpack.c.l.b16 %v324
        %v400 = vunpack.c.l.b16 %v325
        %v401 = vunpack.c.l.b16 %v326
        %v402 = vunpack.c.l.b16 %v327
        %v403 = vunpack.c.l.b16 %v328
        %v404 = vunpack.c.l.b16 %v329
        %v405 = vunpack.c.l.b16 %v330
        %v406 = vunpack.c.l.b16 %v331
        %v407 = vunpack.c.l.b16 %v332
        %v408 = vunpack.c.l.b16 %v333
        %v409 = vunpack.c.l.b16 %v334
        %v410 = vunpack.c.l.b16 %v335
        %v411 = vunpack.c.l.b16 %v336
        %v412 = vunpack.c.l.b16 %v337
        %v413 = vunpack.c.l.b16 %v338
        %v414 = vunpack.c.l.b16 %v339
        %v415 = vunpack.c.l.b16 %v340
        %v416 = vunpack.c.l.b16 %v341
        %v417 = vunpack.c.l.b16 %v342
        %v418 = vunpack.c.l.b16 %v343
        %v419 = vunpack.c.l.b16 %v344
        %v420 = vunpack.c.l.b16 %v345
        %v421 = vunpack.c.l.b16 %v346
        %v422 = vunpack.c.l.b16 %v347
        %v423 = vunpack.c.l.b16 %v348
        %v424 = vunpack.c.l.b16 %v349
        %v425 = vunpack.c.l.b16 %v350
        %v426 = vunpack.c.l.b16 %v351
        %v427 = vunpack.c.l.b16 %v352
        %v428 = vunpack.c.l.b16 %v353
        %v429 = vunpack.c.l.b16 %v354
        %v430 = vunpack.c.l.b16 %v355
        %v431 = vunpack.c.l.b16 %v356
        %v432 = vunpack.c.l.b16 %v357
        %v433 = vpack.c.b16 %v400, %v399
        %v434 = vpack.c.b16 %v402, %v401
        %v435 = vpack.c.b16 %v404, %v403
        %v436 = vpack.c.b16 %v406, %v405
        %v437 = vpack.c.b16 %v408, %v407
        %v438 = vpack.c.b16 %v410, %v409
        %v439 = vpack.c.b16 %v412, %v411
        %v440 = vpack.c.b16 %v414, %v413
        %v441 = vpack.c.b16 %v416, %v415
        %v442 = vpack.c.b16 %v418, %v417
        %v443 = vpack.c.b16 %v420, %v419
        %v444 = vpack.c.b16 %v422, %v421
        %v445 = vpack.c.b16 %v424, %v423
        %v446 = vpack.c.b16 %v426, %v425
        %v447 = vpack.c.b16 %v428, %v427
        %v448 = vpack.c.b16 %v430, %v429
        %v449 = vpack.c.b16 %v432, %v431
        %v456 = vunpack.c.l.b16 %v359
        %v457 = vunpack.c.l.b16 %v360
        %v458 = vunpack.c.l.b16 %v361
        %v459 = vunpack.c.l.b16 %v362
        %v460 = vunpack.c.l.b16 %v363
        %v461 = vunpack.c.l.b16 %v364
        %v462 = vpack.c.b16 %v457, %v456
        %v463 = vpack.c.b16 %v459, %v458
        %v464 = vpack.c.b16 %v461, %v460
        %vm467 = vcmask 343040
        %v469 = vsel %vm467, %v433, 0
        %v472 = vsel %vm467, %v434, 0
        %v475 = vsel %vm467, %v435, 0
        %v478 = vsel %vm467, %v436, 0
        %v481 = vsel %vm467, %v437, 0
        %v484 = vsel %vm467, %v438, 0
        %v487 = vsel %vm467, %v439, 0
        %v490 = vsel %vm467, %v440, 0
        %v493 = vsel %vm467, %v441, 0
        %v496 = vsel %vm467, %v442, 0
        %v499 = vsel %vm467, %v443, 0
        %v502 = vsel %vm467, %v444, 0
        %v505 = vsel %vm467, %v445, 0
        %v508 = vsel %vm467, %v446, 0
        %v511 = vsel %vm467, %v447, 0
        %v514 = vsel %vm467, %v448, 0
        %v517 = vsel %vm467, %v449, 0
        %vm519 = vcmask 1044480
        %v521 = vsel %vm519, %v464, 0
        %523 = vmatprep.subr.bf16.mxu0 0
        %524 = vmatpush1.bf16.msra.mxu0 %v462
        %525 = vmatprep.subr.bf16.mxu0 0
        %526 = vmatpush1.bf16.msra.mxu0 %v463
        %527 = vmatprep.subr.bf16.mxu0 0
        %528 = vmatpush1.bf16.msra.mxu0 %v521
        %529 = vmatprep.subr.bf16.mxu0 0
        %530 = vmatpush1.bf16.msra.mxu0 0
        %531 = vmatprep.subr.bf16.mxu0 0
        %532 = vmatpush1.bf16.msra.mxu0 0
        %533 = vmatprep.subr.bf16.mxu0 0
        %534 = vmatpush1.bf16.msra.mxu0 0
        %535 = vmatprep.subr.bf16.mxu0 0
        %536 = vmatpush1.bf16.msra.mxu0 0
        %537 = vmatprep.subr.bf16.mxu0 0
        %538 = vmatpush1.bf16.msra.mxu0 0
        %539 = vmatprep.subr.bf16.mxu0 0
        %540 = vmatpush1.bf16.msra.mxu0 0
        %541 = vmatprep.subr.bf16.mxu0 0
        %542 = vmatpush1.bf16.msra.mxu0 0
        %543 = vmatprep.subr.bf16.mxu0 0
        %544 = vmatpush1.bf16.msra.mxu0 0
        %545 = vmatprep.subr.bf16.mxu0 0
        %546 = vmatpush1.bf16.msra.mxu0 0
        %547 = vmatprep.subr.bf16.mxu0 0
        %548 = vmatpush1.bf16.msra.mxu0 0
        %549 = vmatprep.subr.bf16.mxu0 0
        %550 = vmatpush1.bf16.msra.mxu0 0
        %551 = vmatprep.subr.bf16.mxu0 0
        %552 = vmatpush1.bf16.msra.mxu0 0
        %553 = vmatprep.subr.bf16.mxu0 0
        %554 = vmatpush1.bf16.msra.mxu0 0
        %555 = vmatprep.mubr.bf16.mxu0 0
        %556 = vmatmul.mubr.bf16.gmra.mrb[0].mxu0 %v469
        %v557 = vpop.f32.mrb[0].mxu0
        %v558 = vadd.f32 0.0, %v557
        %v559 = vpop.f32.mrb[0].mxu0
        %v560 = vpop.f32.mrb[0].mxu0
        %v561 = vadd.f32 0.0, %v560
        %v562 = vpop.f32.mrb[0].mxu0
        %563 = vmatprep.mubr.bf16.mxu0 0
        %564 = vmatmul.mubr.bf16.gmra.mrb[0].mxu0 %v472
        %v565 = vpop.f32.mrb[0].mxu0
        %v566 = vadd.f32 0.0, %v565
        %v567 = vpop.f32.mrb[0].mxu0
        %v568 = vpop.f32.mrb[0].mxu0
        %v569 = vadd.f32 0.0, %v568
        %v570 = vpop.f32.mrb[0].mxu0
        %571 = vmatprep.mubr.bf16.mxu0 0
        %572 = vmatmul.mubr.bf16.gmra.mrb[0].mxu0 %v475
        %v573 = vpop.f32.mrb[0].mxu0
        %v574 = vadd.f32 0.0, %v573
        %v575 = vpop.f32.mrb[0].mxu0
        %v576 = vpop.f32.mrb[0].mxu0
        %v577 = vadd.f32 0.0, %v576
        %v578 = vpop.f32.mrb[0].mxu0
        %579 = vmatprep.mubr.bf16.mxu0 0
        %580 = vmatmul.mubr.bf16.gmra.mrb[0].mxu0 %v478
        %v581 = vpop.f32.mrb[0].mxu0
        %v582 = vadd.f32 0.0, %v581
        %v583 = vpop.f32.mrb[0].mxu0
        %v584 = vpop.f32.mrb[0].mxu0
        %v585 = vadd.f32 0.0, %v584
        %v586 = vpop.f32.mrb[0].mxu0
        %587 = vmatprep.mubr.bf16.mxu0 0
        %588 = vmatmul.mubr.bf16.gmra.mrb[0].mxu0 %v481
        %v589 = vpop.f32.mrb[0].mxu0
        %v590 = vadd.f32 0.0, %v589
        %v591 = vpop.f32.mrb[0].mxu0
        %v592 = vpop.f32.mrb[0].mxu0
        %v593 = vadd.f32 0.0, %v592
        %v594 = vpop.f32.mrb[0].mxu0
        %595 = vmatprep.mubr.bf16.mxu0 0
        %596 = vmatmul.mubr.bf16.gmra.mrb[0].mxu0 %v484
        %v597 = vpop.f32.mrb[0].mxu0
        %v598 = vadd.f32 0.0, %v597
        %v599 = vpop.f32.mrb[0].mxu0
        %v600 = vpop.f32.mrb[0].mxu0
        %v601 = vadd.f32 0.0, %v600
        %v602 = vpop.f32.mrb[0].mxu0
        %603 = vmatprep.mubr.bf16.mxu0 0
        %604 = vmatmul.mubr.bf16.gmra.mrb[0].mxu0 %v487
        %v605 = vpop.f32.mrb[0].mxu0
        %v606 = vadd.f32 0.0, %v605
        %v607 = vpop.f32.mrb[0].mxu0
        %v608 = vpop.f32.mrb[0].mxu0
        %v609 = vadd.f32 0.0, %v608
        %v610 = vpop.f32.mrb[0].mxu0
        %611 = vmatprep.mubr.bf16.mxu0 0
        %612 = vmatmul.mubr.bf16.gmra.mrb[0].mxu0 %v490
        %v613 = vpop.f32.mrb[0].mxu0
        %v614 = vadd.f32 0.0, %v613
        %v615 = vpop.f32.mrb[0].mxu0
        %v616 = vpop.f32.mrb[0].mxu0
        %v617 = vadd.f32 0.0, %v616
        %v618 = vpop.f32.mrb[0].mxu0
        %619 = vmatprep.mubr.bf16.mxu0 0
        %620 = vmatmul.mubr.bf16.gmra.mrb[0].mxu0 %v493
        %v621 = vpop.f32.mrb[0].mxu0
        %v622 = vadd.f32 0.0, %v621
        %v623 = vpop.f32.mrb[0].mxu0
        %v624 = vpop.f32.mrb[0].mxu0
        %v625 = vadd.f32 0.0, %v624
        %v626 = vpop.f32.mrb[0].mxu0
        %627 = vmatprep.mubr.bf16.mxu0 0
        %628 = vmatmul.mubr.bf16.gmra.mrb[0].mxu0 %v496
        %v629 = vpop.f32.mrb[0].mxu0
        %v630 = vadd.f32 0.0, %v629
        %v631 = vpop.f32.mrb[0].mxu0
        %v632 = vpop.f32.mrb[0].mxu0
        %v633 = vadd.f32 0.0, %v632
        %v634 = vpop.f32.mrb[0].mxu0
        %635 = vmatprep.mubr.bf16.mxu0 0
        %636 = vmatmul.mubr.bf16.gmra.mrb[0].mxu0 %v499
        %v637 = vpop.f32.mrb[0].mxu0
        %v638 = vadd.f32 0.0, %v637
        %v639 = vpop.f32.mrb[0].mxu0
        %v640 = vpop.f32.mrb[0].mxu0
        %v641 = vadd.f32 0.0, %v640
        %v642 = vpop.f32.mrb[0].mxu0
        %643 = vmatprep.mubr.bf16.mxu0 0
        %644 = vmatmul.mubr.bf16.gmra.mrb[0].mxu0 %v502
        %v645 = vpop.f32.mrb[0].mxu0
        %v646 = vadd.f32 0.0, %v645
        %v647 = vpop.f32.mrb[0].mxu0
        %v648 = vpop.f32.mrb[0].mxu0
        %v649 = vadd.f32 0.0, %v648
        %v650 = vpop.f32.mrb[0].mxu0
        %651 = vmatprep.mubr.bf16.mxu0 0
        %652 = vmatmul.mubr.bf16.gmra.mrb[0].mxu0 %v505
        %v653 = vpop.f32.mrb[0].mxu0
        %v654 = vadd.f32 0.0, %v653
        %v655 = vpop.f32.mrb[0].mxu0
        %v656 = vpop.f32.mrb[0].mxu0
        %v657 = vadd.f32 0.0, %v656
        %v658 = vpop.f32.mrb[0].mxu0
        %659 = vmatprep.mubr.bf16.mxu0 0
        %660 = vmatmul.mubr.bf16.gmra.mrb[0].mxu0 %v508
        %v661 = vpop.f32.mrb[0].mxu0
        %v662 = vadd.f32 0.0, %v661
        %v663 = vpop.f32.mrb[0].mxu0
        %v664 = vpop.f32.mrb[0].mxu0
        %v665 = vadd.f32 0.0, %v664
        %v666 = vpop.f32.mrb[0].mxu0
        %667 = vmatprep.mubr.bf16.mxu0 0
        %668 = vmatmul.mubr.bf16.gmra.mrb[0].mxu0 %v511
        %v669 = vpop.f32.mrb[0].mxu0
        %v670 = vadd.f32 0.0, %v669
        %v671 = vpop.f32.mrb[0].mxu0
        %v672 = vpop.f32.mrb[0].mxu0
        %v673 = vadd.f32 0.0, %v672
        %v674 = vpop.f32.mrb[0].mxu0
        %675 = vmatprep.mubr.bf16.mxu0 0
        %676 = vmatmul.mubr.bf16.gmra.mrb[0].mxu0 %v514
        %v677 = vpop.f32.mrb[0].mxu0
        %v678 = vadd.f32 0.0, %v677
        %v679 = vpop.f32.mrb[0].mxu0
        %v680 = vpop.f32.mrb[0].mxu0
        %v681 = vadd.f32 0.0, %v680
        %v682 = vpop.f32.mrb[0].mxu0
        %683 = vmatprep.mubr.bf16.mxu0 0
        %684 = vmatmul.mubr.bf16.gmra.mrb[0].mxu0 %v517
        %v685 = vpop.f32.mrb[0].mxu0
        %v686 = vadd.f32 0.0, %v685
        %v687 = vpop.f32.mrb[0].mxu0
        %v688 = vpop.f32.mrb[0].mxu0
        %v689 = vadd.f32 0.0, %v688
        %v690 = vpop.f32.mrb[0].mxu0
        %691 = vdwg.mxu0
        %v726 = vunpack.c.l.b16 %v278
        %v727 = vunpack.c.l.b16 %v279
        %v728 = vunpack.c.l.b16 %v280
        %v729 = vunpack.c.l.b16 %v281
        %v730 = vunpack.c.l.b16 %v282
        %v731 = vunpack.c.l.b16 %v283
        %v732 = vunpack.c.l.b16 %v284
        %v733 = vunpack.c.l.b16 %v285
        %v734 = vunpack.c.l.b16 %v286
        %v735 = vunpack.c.l.b16 %v287
        %v736 = vunpack.c.l.b16 %v288
        %v737 = vunpack.c.l.b16 %v289
        %v738 = vunpack.c.l.b16 %v290
        %v739 = vunpack.c.l.b16 %v291
        %v740 = vunpack.c.l.b16 %v292
        %v741 = vunpack.c.l.b16 %v293
        %v742 = vunpack.c.l.b16 %v294
        %v743 = vunpack.c.l.b16 %v295
        %v744 = vunpack.c.l.b16 %v296
        %v745 = vunpack.c.l.b16 %v297
        %v746 = vunpack.c.l.b16 %v298
        %v747 = vunpack.c.l.b16 %v299
        %v748 = vunpack.c.l.b16 %v300
        %v749 = vunpack.c.l.b16 %v301
        %v750 = vunpack.c.l.b16 %v302
        %v751 = vunpack.c.l.b16 %v303
        %v752 = vunpack.c.l.b16 %v304
        %v753 = vunpack.c.l.b16 %v305
        %v754 = vunpack.c.l.b16 %v306
        %v755 = vunpack.c.l.b16 %v307
        %v756 = vunpack.c.l.b16 %v308
        %v757 = vunpack.c.l.b16 %v309
        %v758 = vunpack.c.l.b16 %v310
        %v759 = vunpack.c.l.b16 %v311
        %v760 = vpack.c.b16 %v727, %v726
        %v761 = vpack.c.b16 %v729, %v728
        %v762 = vpack.c.b16 %v731, %v730
        %v763 = vpack.c.b16 %v733, %v732
        %v764 = vpack.c.b16 %v735, %v734
        %v765 = vpack.c.b16 %v737, %v736
        %v766 = vpack.c.b16 %v739, %v738
        %v767 = vpack.c.b16 %v741, %v740
        %v768 = vpack.c.b16 %v743, %v742
        %v769 = vpack.c.b16 %v745, %v744
        %v770 = vpack.c.b16 %v747, %v746
        %v771 = vpack.c.b16 %v749, %v748
        %v772 = vpack.c.b16 %v751, %v750
        %v773 = vpack.c.b16 %v753, %v752
        %v774 = vpack.c.b16 %v755, %v754
        %v775 = vpack.c.b16 %v757, %v756
        %v776 = vpack.c.b16 %v759, %v758
        %v783 = vunpack.c.l.b16 %v312
        %v784 = vunpack.c.l.b16 %v313
        %v785 = vunpack.c.l.b16 %v314
        %v786 = vunpack.c.l.b16 %v315
        %v787 = vunpack.c.l.b16 %v316
        %v788 = vunpack.c.l.b16 %v317
        %v789 = vpack.c.b16 %v784, %v783
        %v790 = vpack.c.b16 %v786, %v785
        %v791 = vpack.c.b16 %v788, %v787
        %v795 = vsel %vm467, %v760, 0
        %v798 = vsel %vm467, %v761, 0
        %v801 = vsel %vm467, %v762, 0
        %v804 = vsel %vm467, %v763, 0
        %v807 = vsel %vm467, %v764, 0
        %v810 = vsel %vm467, %v765, 0
        %v813 = vsel %vm467, %v766, 0
        %v816 = vsel %vm467, %v767, 0
        %v819 = vsel %vm467, %v768, 0
        %v822 = vsel %vm467, %v769, 0
        %v825 = vsel %vm467, %v770, 0
        %v828 = vsel %vm467, %v771, 0
        %v831 = vsel %vm467, %v772, 0
        %v834 = vsel %vm467, %v773, 0
        %v837 = vsel %vm467, %v774, 0
        %v840 = vsel %vm467, %v775, 0
        %v843 = vsel %vm467, %v776, 0
        %v846 = vsel %vm519, %v791, 0
        %848 = vmatprep.subr.bf16.mxu0 0
        %849 = vmatpush1.bf16.msra.mxu0 %v789
        %850 = vmatprep.subr.bf16.mxu0 0
        %851 = vmatpush1.bf16.msra.mxu0 %v790
        %852 = vmatprep.subr.bf16.mxu0 0
        %853 = vmatpush1.bf16.msra.mxu0 %v846
        %854 = vmatprep.subr.bf16.mxu0 0
        %855 = vmatpush1.bf16.msra.mxu0 0
        %856 = vmatprep.subr.bf16.mxu0 0
        %857 = vmatpush1.bf16.msra.mxu0 0
        %858 = vmatprep.subr.bf16.mxu0 0
        %859 = vmatpush1.bf16.msra.mxu0 0
        %860 = vmatprep.subr.bf16.mxu0 0
        %861 = vmatpush1.bf16.msra.mxu0 0
        %862 = vmatprep.subr.bf16.mxu0 0
        %863 = vmatpush1.bf16.msra.mxu0 0
        %864 = vmatprep.subr.bf16.mxu0 0
        %865 = vmatpush1.bf16.msra.mxu0 0
        %866 = vmatprep.subr.bf16.mxu0 0
        %867 = vmatpush1.bf16.msra.mxu0 0
        %868 = vmatprep.subr.bf16.mxu0 0
        %869 = vmatpush1.bf16.msra.mxu0 0
        %870 = vmatprep.subr.bf16.mxu0 0
        %871 = vmatpush1.bf16.msra.mxu0 0
        %872 = vmatprep.subr.bf16.mxu0 0
        %873 = vmatpush1.bf16.msra.mxu0 0
        %874 = vmatprep.subr.bf16.mxu0 0
        %875 = vmatpush1.bf16.msra.mxu0 0
        %876 = vmatprep.subr.bf16.mxu0 0
        %877 = vmatpush1.bf16.msra.mxu0 0
        %878 = vmatprep.subr.bf16.mxu0 0
        %879 = vmatpush1.bf16.msra.mxu0 0
        %880 = vmatprep.mubr.bf16.mxu0 0
        %881 = vmatmul.mubr.bf16.gmra.mrb[0].mxu0 %v795
        %v882 = vpop.f32.mrb[0].mxu0
        %v883 = vadd.f32 %v558, %v882
        %v884 = vpop.f32.mrb[0].mxu0
        %v885 = vpop.f32.mrb[0].mxu0
        %v886 = vadd.f32 %v561, %v885
        %v887 = vpop.f32.mrb[0].mxu0
        %888 = vmatprep.mubr.bf16.mxu0 0
        %889 = vmatmul.mubr.bf16.gmra.mrb[0].mxu0 %v798
        %v890 = vpop.f32.mrb[0].mxu0
        %v891 = vadd.f32 %v566, %v890
        %v892 = vpop.f32.mrb[0].mxu0
        %v893 = vpop.f32.mrb[0].mxu0
        %v894 = vadd.f32 %v569, %v893
        %v895 = vpop.f32.mrb[0].mxu0
        %896 = vmatprep.mubr.bf16.mxu0 0
        %897 = vmatmul.mubr.bf16.gmra.mrb[0].mxu0 %v801
        %v898 = vpop.f32.mrb[0].mxu0
        %v899 = vadd.f32 %v574, %v898
        %v900 = vpop.f32.mrb[0].mxu0
        %v901 = vpop.f32.mrb[0].mxu0
        %v902 = vadd.f32 %v577, %v901
        %v903 = vpop.f32.mrb[0].mxu0
        %904 = vmatprep.mubr.bf16.mxu0 0
        %905 = vmatmul.mubr.bf16.gmra.mrb[0].mxu0 %v804
        %v906 = vpop.f32.mrb[0].mxu0
        %v907 = vadd.f32 %v582, %v906
        %v908 = vpop.f32.mrb[0].mxu0
        %v909 = vpop.f32.mrb[0].mxu0
        %v910 = vadd.f32 %v585, %v909
        %v911 = vpop.f32.mrb[0].mxu0
        %912 = vmatprep.mubr.bf16.mxu0 0
        %913 = vmatmul.mubr.bf16.gmra.mrb[0].mxu0 %v807
        %v914 = vpop.f32.mrb[0].mxu0
        %v915 = vadd.f32 %v590, %v914
        %v916 = vpop.f32.mrb[0].mxu0
        %v917 = vpop.f32.mrb[0].mxu0
        %v918 = vadd.f32 %v593, %v917
        %v919 = vpop.f32.mrb[0].mxu0
        %920 = vmatprep.mubr.bf16.mxu0 0
        %921 = vmatmul.mubr.bf16.gmra.mrb[0].mxu0 %v810
        %v922 = vpop.f32.mrb[0].mxu0
        %v923 = vadd.f32 %v598, %v922
        %v924 = vpop.f32.mrb[0].mxu0
        %v925 = vpop.f32.mrb[0].mxu0
        %v926 = vadd.f32 %v601, %v925
        %v927 = vpop.f32.mrb[0].mxu0
        %928 = vmatprep.mubr.bf16.mxu0 0
        %929 = vmatmul.mubr.bf16.gmra.mrb[0].mxu0 %v813
        %v930 = vpop.f32.mrb[0].mxu0
        %v931 = vadd.f32 %v606, %v930
        %v932 = vpop.f32.mrb[0].mxu0
        %v933 = vpop.f32.mrb[0].mxu0
        %v934 = vadd.f32 %v609, %v933
        %v935 = vpop.f32.mrb[0].mxu0
        %936 = vmatprep.mubr.bf16.mxu0 0
        %937 = vmatmul.mubr.bf16.gmra.mrb[0].mxu0 %v816
        %v938 = vpop.f32.mrb[0].mxu0
        %v939 = vadd.f32 %v614, %v938
        %v940 = vpop.f32.mrb[0].mxu0
        %v941 = vpop.f32.mrb[0].mxu0
        %v942 = vadd.f32 %v617, %v941
        %v943 = vpop.f32.mrb[0].mxu0
        %944 = vmatprep.mubr.bf16.mxu0 0
        %945 = vmatmul.mubr.bf16.gmra.mrb[0].mxu0 %v819
        %v946 = vpop.f32.mrb[0].mxu0
        %v947 = vadd.f32 %v622, %v946
        %v948 = vpop.f32.mrb[0].mxu0
        %v949 = vpop.f32.mrb[0].mxu0
        %v950 = vadd.f32 %v625, %v949
        %v951 = vpop.f32.mrb[0].mxu0
        %952 = vmatprep.mubr.bf16.mxu0 0
        %953 = vmatmul.mubr.bf16.gmra.mrb[0].mxu0 %v822
        %v954 = vpop.f32.mrb[0].mxu0
        %v955 = vadd.f32 %v630, %v954
        %v956 = vpop.f32.mrb[0].mxu0
        %v957 = vpop.f32.mrb[0].mxu0
        %v958 = vadd.f32 %v633, %v957
        %v959 = vpop.f32.mrb[0].mxu0
        %960 = vmatprep.mubr.bf16.mxu0 0
        %961 = vmatmul.mubr.bf16.gmra.mrb[0].mxu0 %v825
        %v962 = vpop.f32.mrb[0].mxu0
        %v963 = vadd.f32 %v638, %v962
        %v964 = vpop.f32.mrb[0].mxu0
        %v965 = vpop.f32.mrb[0].mxu0
        %v966 = vadd.f32 %v641, %v965
        %v967 = vpop.f32.mrb[0].mxu0
        %968 = vmatprep.mubr.bf16.mxu0 0
        %969 = vmatmul.mubr.bf16.gmra.mrb[0].mxu0 %v828
        %v970 = vpop.f32.mrb[0].mxu0
        %v971 = vadd.f32 %v646, %v970
        %v972 = vpop.f32.mrb[0].mxu0
        %v973 = vpop.f32.mrb[0].mxu0
        %v974 = vadd.f32 %v649, %v973
        %v975 = vpop.f32.mrb[0].mxu0
        %976 = vmatprep.mubr.bf16.mxu0 0
        %977 = vmatmul.mubr.bf16.gmra.mrb[0].mxu0 %v831
        %v978 = vpop.f32.mrb[0].mxu0
        %v979 = vadd.f32 %v654, %v978
        %v980 = vpop.f32.mrb[0].mxu0
        %v981 = vpop.f32.mrb[0].mxu0
        %v982 = vadd.f32 %v657, %v981
        %v983 = vpop.f32.mrb[0].mxu0
        %984 = vmatprep.mubr.bf16.mxu0 0
        %985 = vmatmul.mubr.bf16.gmra.mrb[0].mxu0 %v834
        %v986 = vpop.f32.mrb[0].mxu0
        %v987 = vadd.f32 %v662, %v986
        %v988 = vpop.f32.mrb[0].mxu0
        %v989 = vpop.f32.mrb[0].mxu0
        %v990 = vadd.f32 %v665, %v989
        %v991 = vpop.f32.mrb[0].mxu0
        %992 = vmatprep.mubr.bf16.mxu0 0
        %993 = vmatmul.mubr.bf16.gmra.mrb[0].mxu0 %v837
        %v994 = vpop.f32.mrb[0].mxu0
        %v995 = vadd.f32 %v670, %v994
        %v996 = vpop.f32.mrb[0].mxu0
        %v997 = vpop.f32.mrb[0].mxu0
        %v998 = vadd.f32 %v673, %v997
        %v999 = vpop.f32.mrb[0].mxu0
        %1000 = vmatprep.mubr.bf16.mxu0 0
        %1001 = vmatmul.mubr.bf16.gmra.mrb[0].mxu0 %v840
        %v1002 = vpop.f32.mrb[0].mxu0
        %v1003 = vadd.f32 %v678, %v1002
        %v1004 = vpop.f32.mrb[0].mxu0
        %v1005 = vpop.f32.mrb[0].mxu0
        %v1006 = vadd.f32 %v681, %v1005
        %v1007 = vpop.f32.mrb[0].mxu0
        %1008 = vmatprep.mubr.bf16.mxu0 0
        %1009 = vmatmul.mubr.bf16.gmra.mrb[0].mxu0 %v843
        %v1010 = vpop.f32.mrb[0].mxu0
        %v1011 = vadd.f32 %v686, %v1010
        %v1012 = vpop.f32.mrb[0].mxu0
        %v1013 = vpop.f32.mrb[0].mxu0
        %v1014 = vadd.f32 %v689, %v1013
        %v1015 = vpop.f32.mrb[0].mxu0
        %1016 = vdwg.mxu0
        %s1017 = sadd.s32 %s272, 2
        %s1018 = smul.u32 %s1017, 16
        %s1019 = sshra.s32 %s1018, 3
        %s1020 = sand.u32 %s1018, 7
        %s1021 = smul.addr %s1019, 4
        %s1022 = scalar_lea.vmem %s233, %s1021 [#allocation4]
        %v1023 = vld [vmem:[%s1022] sm:$0xf]
        %v1024 = vld [vmem:[%s1022 + $0x4] sm:$0xf]
        %v1025 = vld [vmem:[%s1022 + $0x8] sm:$0xf]
        %v1026 = vld [vmem:[%s1022 + $0xc] sm:$0xf]
        %v1027 = vld [vmem:[%s1022 + $0x10] sm:$0xf]
        %v1028 = vld [vmem:[%s1022 + $0x14] sm:$0xf]
        %v1029 = vld [vmem:[%s1022 + $0x18] sm:$0xf]
        %v1030 = vld [vmem:[%s1022 + $0x1c] sm:$0xf]
        %v1031 = vld [vmem:[%s1022 + $0x20] sm:$0xf]
        %v1032 = vld [vmem:[%s1022 + $0x24] sm:$0xf]
        %v1033 = vld [vmem:[%s1022 + $0x28] sm:$0xf]
        %v1034 = vld [vmem:[%s1022 + $0x2c] sm:$0xf]
        %v1035 = vld [vmem:[%s1022 + $0x30] sm:$0xf]
        %v1036 = vld [vmem:[%s1022 + $0x34] sm:$0xf]
        %v1037 = vld [vmem:[%s1022 + $0x38] sm:$0xf]
        %v1038 = vld [vmem:[%s1022 + $0x3c] sm:$0xf]
        %v1039 = vld [vmem:[%s1022 + $0x40] sm:$0xf]
        %v1040 = vld [vmem:[%s1022 + $0x44] sm:$0xf]
        %v1041 = vld [vmem:[%s1022 + $0x48] sm:$0xf]
        %v1042 = vld [vmem:[%s1022 + $0x4c] sm:$0xf]
        %v1043 = vld [vmem:[%s1022 + $0x50] sm:$0xf]
        %v1044 = vld [vmem:[%s1022 + $0x54] sm:$0xf]
        %v1045 = vld [vmem:[%s1022 + $0x58] sm:$0xf]
        %v1046 = vld [vmem:[%s1022 + $0x5c] sm:$0xf]
        %v1047 = vld [vmem:[%s1022 + $0x60] sm:$0xf]
        %v1048 = vld [vmem:[%s1022 + $0x64] sm:$0xf]
        %v1049 = vld [vmem:[%s1022 + $0x68] sm:$0xf]
        %v1050 = vld [vmem:[%s1022 + $0x6c] sm:$0xf]
        %v1051 = vld [vmem:[%s1022 + $0x70] sm:$0xf]
        %v1052 = vld [vmem:[%s1022 + $0x74] sm:$0xf]
        %v1053 = vld [vmem:[%s1022 + $0x78] sm:$0xf]
        %v1054 = vld [vmem:[%s1022 + $0x7c] sm:$0xf]
        %v1055 = vld [vmem:[%s1022 + $0x80] sm:$0xf]
        %v1056 = vld [vmem:[%s1022 + $0x84] sm:$0xf]
        %s1057 = scalar_lea.vmem [#allocation7], 48
        %v1058 = vld [vmem:[%s1057] sm:$0xf]
        %v1059 = vld [vmem:[%s1057 + $0x4] sm:$0xf]
        %v1060 = vld [vmem:[%s1057 + $0x8] sm:$0xf]
        %v1061 = vld [vmem:[%s1057 + $0xc] sm:$0xf]
        %v1062 = vld [vmem:[%s1057 + $0x10] sm:$0xf]
        %v1063 = vld [vmem:[%s1057 + $0x14] sm:$0x1]
        %v1098 = vunpack.c.l.b16 %v1023
        %v1099 = vunpack.c.l.b16 %v1024
        %v1100 = vunpack.c.l.b16 %v1025
        %v1101 = vunpack.c.l.b16 %v1026
        %v1102 = vunpack.c.l.b16 %v1027
        %v1103 = vunpack.c.l.b16 %v1028
        %v1104 = vunpack.c.l.b16 %v1029
        %v1105 = vunpack.c.l.b16 %v1030
        %v1106 = vunpack.c.l.b16 %v1031
        %v1107 = vunpack.c.l.b16 %v1032
        %v1108 = vunpack.c.l.b16 %v1033
        %v1109 = vunpack.c.l.b16 %v1034
        %v1110 = vunpack.c.l.b16 %v1035
        %v1111 = vunpack.c.l.b16 %v1036
        %v1112 = vunpack.c.l.b16 %v1037
        %v1113 = vunpack.c.l.b16 %v1038
        %v1114 = vunpack.c.l.b16 %v1039
        %v1115 = vunpack.c.l.b16 %v1040
        %v1116 = vunpack.c.l.b16 %v1041
        %v1117 = vunpack.c.l.b16 %v1042
        %v1118 = vunpack.c.l.b16 %v1043
        %v1119 = vunpack.c.l.b16 %v1044
        %v1120 = vunpack.c.l.b16 %v1045
        %v1121 = vunpack.c.l.b16 %v1046
        %v1122 = vunpack.c.l.b16 %v1047
        %v1123 = vunpack.c.l.b16 %v1048
        %v1124 = vunpack.c.l.b16 %v1049
        %v1125 = vunpack.c.l.b16 %v1050
        %v1126 = vunpack.c.l.b16 %v1051
        %v1127 = vunpack.c.l.b16 %v1052
        %v1128 = vunpack.c.l.b16 %v1053
        %v1129 = vunpack.c.l.b16 %v1054
        %v1130 = vunpack.c.l.b16 %v1055
        %v1131 = vunpack.c.l.b16 %v1056
        %v1132 = vpack.c.b16 %v1099, %v1098
        %v1133 = vpack.c.b16 %v1101, %v1100
        %v1134 = vpack.c.b16 %v1103, %v1102
        %v1135 = vpack.c.b16 %v1105, %v1104
        %v1136 = vpack.c.b16 %v1107, %v1106
        %v1137 = vpack.c.b16 %v1109, %v1108
        %v1138 = vpack.c.b16 %v1111, %v1110
        %v1139 = vpack.c.b16 %v1113, %v1112
        %v1140 = vpack.c.b16 %v1115, %v1114
        %v1141 = vpack.c.b16 %v1117, %v1116
        %v1142 = vpack.c.b16 %v1119, %v1118
        %v1143 = vpack.c.b16 %v1121, %v1120
        %v1144 = vpack.c.b16 %v1123, %v1122
        %v1145 = vpack.c.b16 %v1125, %v1124
        %v1146 = vpack.c.b16 %v1127, %v1126
        %v1147 = vpack.c.b16 %v1129, %v1128
        %v1148 = vpack.c.b16 %v1131, %v1130
        %v1155 = vunpack.c.l.b16 %v1058
        %v1156 = vunpack.c.l.b16 %v1059
        %v1157 = vunpack.c.l.b16 %v1060
        %v1158 = vunpack.c.l.b16 %v1061
        %v1159 = vunpack.c.l.b16 %v1062
        %v1160 = vunpack.c.l.b16 %v1063
        %v1161 = vpack.c.b16 %v1156, %v1155
        %v1162 = vpack.c.b16 %v1158, %v1157
        %v1163 = vpack.c.b16 %v1160, %v1159
        %v1167 = vsel %vm467, %v1132, 0
        %v1170 = vsel %vm467, %v1133, 0
        %v1173 = vsel %vm467, %v1134, 0
        %v1176 = vsel %vm467, %v1135, 0
        %v1179 = vsel %vm467, %v1136, 0
        %v1182 = vsel %vm467, %v1137, 0
        %v1185 = vsel %vm467, %v1138, 0
        %v1188 = vsel %vm467, %v1139, 0
        %v1191 = vsel %vm467, %v1140, 0
        %v1194 = vsel %vm467, %v1141, 0
        %v1197 = vsel %vm467, %v1142, 0
        %v1200 = vsel %vm467, %v1143, 0
        %v1203 = vsel %vm467, %v1144, 0
        %v1206 = vsel %vm467, %v1145, 0
        %v1209 = vsel %vm467, %v1146, 0
        %v1212 = vsel %vm467, %v1147, 0
        %v1215 = vsel %vm467, %v1148, 0
        %v1218 = vsel %vm519, %v1163, 0
        %1220 = vmatprep.subr.bf16.mxu0 0
        %1221 = vmatpush1.bf16.msra.mxu0 %v1161
        %1222 = vmatprep.subr.bf16.mxu0 0
        %1223 = vmatpush1.bf16.msra.mxu0 %v1162
        %1224 = vmatprep.subr.bf16.mxu0 0
        %1225 = vmatpush1.bf16.msra.mxu0 %v1218
        %1226 = vmatprep.subr.bf16.mxu0 0
        %1227 = vmatpush1.bf16.msra.mxu0 0
        %1228 = vmatprep.subr.bf16.mxu0 0
        %1229 = vmatpush1.bf16.msra.mxu0 0
        %1230 = vmatprep.subr.bf16.mxu0 0
        %1231 = vmatpush1.bf16.msra.mxu0 0
        %1232 = vmatprep.subr.bf16.mxu0 0
        %1233 = vmatpush1.bf16.msra.mxu0 0
        %1234 = vmatprep.subr.bf16.mxu0 0
        %1235 = vmatpush1.bf16.msra.mxu0 0
        %1236 = vmatprep.subr.bf16.mxu0 0
        %1237 = vmatpush1.bf16.msra.mxu0 0
        %1238 = vmatprep.subr.bf16.mxu0 0
        %1239 = vmatpush1.bf16.msra.mxu0 0
        %1240 = vmatprep.subr.bf16.mxu0 0
        %1241 = vmatpush1.bf16.msra.mxu0 0
        %1242 = vmatprep.subr.bf16.mxu0 0
        %1243 = vmatpush1.bf16.msra.mxu0 0
        %1244 = vmatprep.subr.bf16.mxu0 0
        %1245 = vmatpush1.bf16.msra.mxu0 0
        %1246 = vmatprep.subr.bf16.mxu0 0
        %1247 = vmatpush1.bf16.msra.mxu0 0
        %1248 = vmatprep.subr.bf16.mxu0 0
        %1249 = vmatpush1.bf16.msra.mxu0 0
        %1250 = vmatprep.subr.bf16.mxu0 0
        %1251 = vmatpush1.bf16.msra.mxu0 0
        %1252 = vmatprep.mubr.bf16.mxu0 0
        %1253 = vmatmul.mubr.bf16.gmra.mrb[0].mxu0 %v1167
        %v1254 = vpop.f32.mrb[0].mxu0
        %v1255 = vadd.f32 0.0, %v1254
        %v1256 = vpop.f32.mrb[0].mxu0
        %v1257 = vpop.f32.mrb[0].mxu0
        %v1258 = vadd.f32 0.0, %v1257
        %v1259 = vpop.f32.mrb[0].mxu0
        %1260 = vmatprep.mubr.bf16.mxu0 0
        %1261 = vmatmul.mubr.bf16.gmra.mrb[0].mxu0 %v1170
        %v1262 = vpop.f32.mrb[0].mxu0
        %v1263 = vadd.f32 0.0, %v1262
        %v1264 = vpop.f32.mrb[0].mxu0
        %v1265 = vpop.f32.mrb[0].mxu0
        %v1266 = vadd.f32 0.0, %v1265
        %v1267 = vpop.f32.mrb[0].mxu0
        %1268 = vmatprep.mubr.bf16.mxu0 0
        %1269 = vmatmul.mubr.bf16.gmra.mrb[0].mxu0 %v1173
        %v1270 = vpop.f32.mrb[0].mxu0
        %v1271 = vadd.f32 0.0, %v1270
        %v1272 = vpop.f32.mrb[0].mxu0
        %v1273 = vpop.f32.mrb[0].mxu0
        %v1274 = vadd.f32 0.0, %v1273
        %v1275 = vpop.f32.mrb[0].mxu0
        %1276 = vmatprep.mubr.bf16.mxu0 0
        %1277 = vmatmul.mubr.bf16.gmra.mrb[0].mxu0 %v1176
        %v1278 = vpop.f32.mrb[0].mxu0
        %v1279 = vadd.f32 0.0, %v1278
        %v1280 = vpop.f32.mrb[0].mxu0
        %v1281 = vpop.f32.mrb[0].mxu0
        %v1282 = vadd.f32 0.0, %v1281
        %v1283 = vpop.f32.mrb[0].mxu0
        %1284 = vmatprep.mubr.bf16.mxu0 0
        %1285 = vmatmul.mubr.bf16.gmra.mrb[0].mxu0 %v1179
        %v1286 = vpop.f32.mrb[0].mxu0
        %v1287 = vadd.f32 0.0, %v1286
        %v1288 = vpop.f32.mrb[0].mxu0
        %v1289 = vpop.f32.mrb[0].mxu0
        %v1290 = vadd.f32 0.0, %v1289
        %v1291 = vpop.f32.mrb[0].mxu0
        %1292 = vmatprep.mubr.bf16.mxu0 0
        %1293 = vmatmul.mubr.bf16.gmra.mrb[0].mxu0 %v1182
        %v1294 = vpop.f32.mrb[0].mxu0
        %v1295 = vadd.f32 0.0, %v1294
        %v1296 = vpop.f32.mrb[0].mxu0
        %v1297 = vpop.f32.mrb[0].mxu0
        %v1298 = vadd.f32 0.0, %v1297
        %v1299 = vpop.f32.mrb[0].mxu0
        %1300 = vmatprep.mubr.bf16.mxu0 0
        %1301 = vmatmul.mubr.bf16.gmra.mrb[0].mxu0 %v1185
        %v1302 = vpop.f32.mrb[0].mxu0
        %v1303 = vadd.f32 0.0, %v1302
        %v1304 = vpop.f32.mrb[0].mxu0
        %v1305 = vpop.f32.mrb[0].mxu0
        %v1306 = vadd.f32 0.0, %v1305
        %v1307 = vpop.f32.mrb[0].mxu0
        %1308 = vmatprep.mubr.bf16.mxu0 0
        %1309 = vmatmul.mubr.bf16.gmra.mrb[0].mxu0 %v1188
        %v1310 = vpop.f32.mrb[0].mxu0
        %v1311 = vadd.f32 0.0, %v1310
        %v1312 = vpop.f32.mrb[0].mxu0
        %v1313 = vpop.f32.mrb[0].mxu0
        %v1314 = vadd.f32 0.0, %v1313
        %v1315 = vpop.f32.mrb[0].mxu0
        %1316 = vmatprep.mubr.bf16.mxu0 0
        %1317 = vmatmul.mubr.bf16.gmra.mrb[0].mxu0 %v1191
        %v1318 = vpop.f32.mrb[0].mxu0
        %v1319 = vadd.f32 0.0, %v1318
        %v1320 = vpop.f32.mrb[0].mxu0
        %v1321 = vpop.f32.mrb[0].mxu0
        %v1322 = vadd.f32 0.0, %v1321
        %v1323 = vpop.f32.mrb[0].mxu0
        %1324 = vmatprep.mubr.bf16.mxu0 0
        %1325 = vmatmul.mubr.bf16.gmra.mrb[0].mxu0 %v1194
        %v1326 = vpop.f32.mrb[0].mxu0
        %v1327 = vadd.f32 0.0, %v1326
        %v1328 = vpop.f32.mrb[0].mxu0
        %v1329 = vpop.f32.mrb[0].mxu0
        %v1330 = vadd.f32 0.0, %v1329
        %v1331 = vpop.f32.mrb[0].mxu0
        %1332 = vmatprep.mubr.bf16.mxu0 0
        %1333 = vmatmul.mubr.bf16.gmra.mrb[0].mxu0 %v1197
        %v1334 = vpop.f32.mrb[0].mxu0
        %v1335 = vadd.f32 0.0, %v1334
        %v1336 = vpop.f32.mrb[0].mxu0
        %v1337 = vpop.f32.mrb[0].mxu0
        %v1338 = vadd.f32 0.0, %v1337
        %v1339 = vpop.f32.mrb[0].mxu0
        %1340 = vmatprep.mubr.bf16.mxu0 0
        %1341 = vmatmul.mubr.bf16.gmra.mrb[0].mxu0 %v1200
        %v1342 = vpop.f32.mrb[0].mxu0
        %v1343 = vadd.f32 0.0, %v1342
        %v1344 = vpop.f32.mrb[0].mxu0
        %v1345 = vpop.f32.mrb[0].mxu0
        %v1346 = vadd.f32 0.0, %v1345
        %v1347 = vpop.f32.mrb[0].mxu0
        %1348 = vmatprep.mubr.bf16.mxu0 0
        %1349 = vmatmul.mubr.bf16.gmra.mrb[0].mxu0 %v1203
        %v1350 = vpop.f32.mrb[0].mxu0
        %v1351 = vadd.f32 0.0, %v1350
        %v1352 = vpop.f32.mrb[0].mxu0
        %v1353 = vpop.f32.mrb[0].mxu0
        %v1354 = vadd.f32 0.0, %v1353
        %v1355 = vpop.f32.mrb[0].mxu0
        %1356 = vmatprep.mubr.bf16.mxu0 0
        %1357 = vmatmul.mubr.bf16.gmra.mrb[0].mxu0 %v1206
        %v1358 = vpop.f32.mrb[0].mxu0
        %v1359 = vadd.f32 0.0, %v1358
        %v1360 = vpop.f32.mrb[0].mxu0
        %v1361 = vpop.f32.mrb[0].mxu0
        %v1362 = vadd.f32 0.0, %v1361
        %v1363 = vpop.f32.mrb[0].mxu0
        %1364 = vmatprep.mubr.bf16.mxu0 0
        %1365 = vmatmul.mubr.bf16.gmra.mrb[0].mxu0 %v1209
        %v1366 = vpop.f32.mrb[0].mxu0
        %v1367 = vadd.f32 0.0, %v1366
        %v1368 = vpop.f32.mrb[0].mxu0
        %v1369 = vpop.f32.mrb[0].mxu0
        %v1370 = vadd.f32 0.0, %v1369
        %v1371 = vpop.f32.mrb[0].mxu0
        %1372 = vmatprep.mubr.bf16.mxu0 0
        %1373 = vmatmul.mubr.bf16.gmra.mrb[0].mxu0 %v1212
        %v1374 = vpop.f32.mrb[0].mxu0
        %v1375 = vadd.f32 0.0, %v1374
        %v1376 = vpop.f32.mrb[0].mxu0
        %v1377 = vpop.f32.mrb[0].mxu0
        %v1378 = vadd.f32 0.0, %v1377
        %v1379 = vpop.f32.mrb[0].mxu0
        %1380 = vmatprep.mubr.bf16.mxu0 0
        %1381 = vmatmul.mubr.bf16.gmra.mrb[0].mxu0 %v1215
        %v1382 = vpop.f32.mrb[0].mxu0
        %v1383 = vadd.f32 0.0, %v1382
        %v1384 = vpop.f32.mrb[0].mxu0
        %v1385 = vpop.f32.mrb[0].mxu0
        %v1386 = vadd.f32 0.0, %v1385
        %v1387 = vpop.f32.mrb[0].mxu0
        %1388 = vdwg.mxu0
        %v1389 = vadd.f32 %v883, %v1255
        %v1390 = vadd.f32 %v886, %v1258
        %v1391 = vadd.f32 %v891, %v1263
        %v1392 = vadd.f32 %v894, %v1266
        %v1393 = vadd.f32 %v899, %v1271
        %v1394 = vadd.f32 %v902, %v1274
        %v1395 = vadd.f32 %v907, %v1279
        %v1396 = vadd.f32 %v910, %v1282
        %v1397 = vadd.f32 %v915, %v1287
        %v1398 = vadd.f32 %v918, %v1290
        %v1399 = vadd.f32 %v923, %v1295
        %v1400 = vadd.f32 %v926, %v1298
        %v1401 = vadd.f32 %v931, %v1303
        %v1402 = vadd.f32 %v934, %v1306
        %v1403 = vadd.f32 %v939, %v1311
        %v1404 = vadd.f32 %v942, %v1314
        %v1405 = vadd.f32 %v947, %v1319
        %v1406 = vadd.f32 %v950, %v1322
        %v1407 = vadd.f32 %v955, %v1327
        %v1408 = vadd.f32 %v958, %v1330
        %v1409 = vadd.f32 %v963, %v1335
        %v1410 = vadd.f32 %v966, %v1338
        %v1411 = vadd.f32 %v971, %v1343
        %v1412 = vadd.f32 %v974, %v1346
        %v1413 = vadd.f32 %v979, %v1351
        %v1414 = vadd.f32 %v982, %v1354
        %v1415 = vadd.f32 %v987, %v1359
        %v1416 = vadd.f32 %v990, %v1362
        %v1417 = vadd.f32 %v995, %v1367
        %v1418 = vadd.f32 %v998, %v1370
        %v1419 = vadd.f32 %v1003, %v1375
        %v1420 = vadd.f32 %v1006, %v1378
        %v1421 = vadd.f32 %v1011, %v1383
        %v1422 = vadd.f32 %v1014, %v1386
        %s1423 = sadd.s32 %s272, 3
        %s1424 = smul.u32 %s1423, 16
        %s1425 = sshra.s32 %s1424, 3
        %s1426 = sand.u32 %s1424, 7
        %s1427 = smul.addr %s1425, 4
        %s1428 = scalar_lea.vmem %s233, %s1427 [#allocation4]
        %v1429 = vld [vmem:[%s1428] sm:$0xf]
        %v1430 = vld [vmem:[%s1428 + $0x4] sm:$0xf]
        %v1431 = vld [vmem:[%s1428 + $0x8] sm:$0xf]
        %v1432 = vld [vmem:[%s1428 + $0xc] sm:$0xf]
        %v1433 = vld [vmem:[%s1428 + $0x10] sm:$0xf]
        %v1434 = vld [vmem:[%s1428 + $0x14] sm:$0xf]
        %v1435 = vld [vmem:[%s1428 + $0x18] sm:$0xf]
        %v1436 = vld [vmem:[%s1428 + $0x1c] sm:$0xf]
        %v1437 = vld [vmem:[%s1428 + $0x20] sm:$0xf]
        %v1438 = vld [vmem:[%s1428 + $0x24] sm:$0xf]
        %v1439 = vld [vmem:[%s1428 + $0x28] sm:$0xf]
        %v1440 = vld [vmem:[%s1428 + $0x2c] sm:$0xf]
        %v1441 = vld [vmem:[%s1428 + $0x30] sm:$0xf]
        %v1442 = vld [vmem:[%s1428 + $0x34] sm:$0xf]
        %v1443 = vld [vmem:[%s1428 + $0x38] sm:$0xf]
        %v1444 = vld [vmem:[%s1428 + $0x3c] sm:$0xf]
        %v1445 = vld [vmem:[%s1428 + $0x40] sm:$0xf]
        %v1446 = vld [vmem:[%s1428 + $0x44] sm:$0xf]
        %v1447 = vld [vmem:[%s1428 + $0x48] sm:$0xf]
        %v1448 = vld [vmem:[%s1428 + $0x4c] sm:$0xf]
        %v1449 = vld [vmem:[%s1428 + $0x50] sm:$0xf]
        %v1450 = vld [vmem:[%s1428 + $0x54] sm:$0xf]
        %v1451 = vld [vmem:[%s1428 + $0x58] sm:$0xf]
        %v1452 = vld [vmem:[%s1428 + $0x5c] sm:$0xf]
        %v1453 = vld [vmem:[%s1428 + $0x60] sm:$0xf]
        %v1454 = vld [vmem:[%s1428 + $0x64] sm:$0xf]
        %v1455 = vld [vmem:[%s1428 + $0x68] sm:$0xf]
        %v1456 = vld [vmem:[%s1428 + $0x6c] sm:$0xf]
        %v1457 = vld [vmem:[%s1428 + $0x70] sm:$0xf]
        %v1458 = vld [vmem:[%s1428 + $0x74] sm:$0xf]
        %v1459 = vld [vmem:[%s1428 + $0x78] sm:$0xf]
        %v1460 = vld [vmem:[%s1428 + $0x7c] sm:$0xf]
        %v1461 = vld [vmem:[%s1428 + $0x80] sm:$0xf]
        %v1462 = vld [vmem:[%s1428 + $0x84] sm:$0xf]
        %s1463 = scalar_lea.vmem [#allocation7], 72
        %v1464 = vld [vmem:[%s1463] sm:$0xf]
        %v1465 = vld [vmem:[%s1463 + $0x4] sm:$0xf]
        %v1466 = vld [vmem:[%s1463 + $0x8] sm:$0xf]
        %v1467 = vld [vmem:[%s1463 + $0xc] sm:$0xf]
        %v1468 = vld [vmem:[%s1463 + $0x10] sm:$0xf]
        %v1469 = vld [vmem:[%s1463 + $0x14] sm:$0x1]
        %v1504 = vunpack.c.l.b16 %v1429
        %v1505 = vunpack.c.l.b16 %v1430
        %v1506 = vunpack.c.l.b16 %v1431
        %v1507 = vunpack.c.l.b16 %v1432
        %v1508 = vunpack.c.l.b16 %v1433
        %v1509 = vunpack.c.l.b16 %v1434
        %v1510 = vunpack.c.l.b16 %v1435
        %v1511 = vunpack.c.l.b16 %v1436
        %v1512 = vunpack.c.l.b16 %v1437
        %v1513 = vunpack.c.l.b16 %v1438
        %v1514 = vunpack.c.l.b16 %v1439
        %v1515 = vunpack.c.l.b16 %v1440
        %v1516 = vunpack.c.l.b16 %v1441
        %v1517 = vunpack.c.l.b16 %v1442
        %v1518 = vunpack.c.l.b16 %v1443
        %v1519 = vunpack.c.l.b16 %v1444
        %v1520 = vunpack.c.l.b16 %v1445
        %v1521 = vunpack.c.l.b16 %v1446
        %v1522 = vunpack.c.l.b16 %v1447
        %v1523 = vunpack.c.l.b16 %v1448
        %v1524 = vunpack.c.l.b16 %v1449
        %v1525 = vunpack.c.l.b16 %v1450
        %v1526 = vunpack.c.l.b16 %v1451
        %v1527 = vunpack.c.l.b16 %v1452
        %v1528 = vunpack.c.l.b16 %v1453
        %v1529 = vunpack.c.l.b16 %v1454
        %v1530 = vunpack.c.l.b16 %v1455
        %v1531 = vunpack.c.l.b16 %v1456
        %v1532 = vunpack.c.l.b16 %v1457
        %v1533 = vunpack.c.l.b16 %v1458
        %v1534 = vunpack.c.l.b16 %v1459
        %v1535 = vunpack.c.l.b16 %v1460
        %v1536 = vunpack.c.l.b16 %v1461
        %v1537 = vunpack.c.l.b16 %v1462
        %v1538 = vpack.c.b16 %v1505, %v1504
        %v1539 = vpack.c.b16 %v1507, %v1506
        %v1540 = vpack.c.b16 %v1509, %v1508
        %v1541 = vpack.c.b16 %v1511, %v1510
        %v1542 = vpack.c.b16 %v1513, %v1512
        %v1543 = vpack.c.b16 %v1515, %v1514
        %v1544 = vpack.c.b16 %v1517, %v1516
        %v1545 = vpack.c.b16 %v1519, %v1518
        %v1546 = vpack.c.b16 %v1521, %v1520
        %v1547 = vpack.c.b16 %v1523, %v1522
        %v1548 = vpack.c.b16 %v1525, %v1524
        %v1549 = vpack.c.b16 %v1527, %v1526
        %v1550 = vpack.c.b16 %v1529, %v1528
        %v1551 = vpack.c.b16 %v1531, %v1530
        %v1552 = vpack.c.b16 %v1533, %v1532
        %v1553 = vpack.c.b16 %v1535, %v1534
        %v1554 = vpack.c.b16 %v1537, %v1536
        %v1561 = vunpack.c.l.b16 %v1464
        %v1562 = vunpack.c.l.b16 %v1465
        %v1563 = vunpack.c.l.b16 %v1466
        %v1564 = vunpack.c.l.b16 %v1467
        %v1565 = vunpack.c.l.b16 %v1468
        %v1566 = vunpack.c.l.b16 %v1469
        %v1567 = vpack.c.b16 %v1562, %v1561
        %v1568 = vpack.c.b16 %v1564, %v1563
        %v1569 = vpack.c.b16 %v1566, %v1565
        %v1573 = vsel %vm467, %v1538, 0
        %v1576 = vsel %vm467, %v1539, 0
        %v1579 = vsel %vm467, %v1540, 0
        %v1582 = vsel %vm467, %v1541, 0
        %v1585 = vsel %vm467, %v1542, 0
        %v1588 = vsel %vm467, %v1543, 0
        %v1591 = vsel %vm467, %v1544, 0
        %v1594 = vsel %vm467, %v1545, 0
        %v1597 = vsel %vm467, %v1546, 0
        %v1600 = vsel %vm467, %v1547, 0
        %v1603 = vsel %vm467, %v1548, 0
        %v1606 = vsel %vm467, %v1549, 0
        %v1609 = vsel %vm467, %v1550, 0
        %v1612 = vsel %vm467, %v1551, 0
        %v1615 = vsel %vm467, %v1552, 0
        %v1618 = vsel %vm467, %v1553, 0
        %v1621 = vsel %vm467, %v1554, 0
        %v1624 = vsel %vm519, %v1569, 0
        %1626 = vmatprep.subr.bf16.mxu0 0
        %1627 = vmatpush1.bf16.msra.mxu0 %v1567
        %1628 = vmatprep.subr.bf16.mxu0 0
        %1629 = vmatpush1.bf16.msra.mxu0 %v1568
        %1630 = vmatprep.subr.bf16.mxu0 0
        %1631 = vmatpush1.bf16.msra.mxu0 %v1624
        %1632 = vmatprep.subr.bf16.mxu0 0
        %1633 = vmatpush1.bf16.msra.mxu0 0
        %1634 = vmatprep.subr.bf16.mxu0 0
        %1635 = vmatpush1.bf16.msra.mxu0 0
        %1636 = vmatprep.subr.bf16.mxu0 0
        %1637 = vmatpush1.bf16.msra.mxu0 0
        %1638 = vmatprep.subr.bf16.mxu0 0
        %1639 = vmatpush1.bf16.msra.mxu0 0
        %1640 = vmatprep.subr.bf16.mxu0 0
        %1641 = vmatpush1.bf16.msra.mxu0 0
        %1642 = vmatprep.subr.bf16.mxu0 0
        %1643 = vmatpush1.bf16.msra.mxu0 0
        %1644 = vmatprep.subr.bf16.mxu0 0
        %1645 = vmatpush1.bf16.msra.mxu0 0
        %1646 = vmatprep.subr.bf16.mxu0 0
        %1647 = vmatpush1.bf16.msra.mxu0 0
        %1648 = vmatprep.subr.bf16.mxu0 0
        %1649 = vmatpush1.bf16.msra.mxu0 0
        %1650 = vmatprep.subr.bf16.mxu0 0
        %1651 = vmatpush1.bf16.msra.mxu0 0
        %1652 = vmatprep.subr.bf16.mxu0 0
        %1653 = vmatpush1.bf16.msra.mxu0 0
        %1654 = vmatprep.subr.bf16.mxu0 0
        %1655 = vmatpush1.bf16.msra.mxu0 0
        %1656 = vmatprep.subr.bf16.mxu0 0
        %1657 = vmatpush1.bf16.msra.mxu0 0
        %1658 = vmatprep.mubr.bf16.mxu0 0
        %1659 = vmatmul.mubr.bf16.gmra.mrb[0].mxu0 %v1573
        %v1660 = vpop.f32.mrb[0].mxu0
        %v1661 = vadd.f32 0.0, %v1660
        %v1662 = vpop.f32.mrb[0].mxu0
        %v1663 = vpop.f32.mrb[0].mxu0
        %v1664 = vadd.f32 0.0, %v1663
        %v1665 = vpop.f32.mrb[0].mxu0
        %1666 = vmatprep.mubr.bf16.mxu0 0
        %1667 = vmatmul.mubr.bf16.gmra.mrb[0].mxu0 %v1576
        %v1668 = vpop.f32.mrb[0].mxu0
        %v1669 = vadd.f32 0.0, %v1668
        %v1670 = vpop.f32.mrb[0].mxu0
        %v1671 = vpop.f32.mrb[0].mxu0
        %v1672 = vadd.f32 0.0, %v1671
        %v1673 = vpop.f32.mrb[0].mxu0
        %1674 = vmatprep.mubr.bf16.mxu0 0
        %1675 = vmatmul.mubr.bf16.gmra.mrb[0].mxu0 %v1579
        %v1676 = vpop.f32.mrb[0].mxu0
        %v1677 = vadd.f32 0.0, %v1676
        %v1678 = vpop.f32.mrb[0].mxu0
        %v1679 = vpop.f32.mrb[0].mxu0
        %v1680 = vadd.f32 0.0, %v1679
        %v1681 = vpop.f32.mrb[0].mxu0
        %1682 = vmatprep.mubr.bf16.mxu0 0
        %1683 = vmatmul.mubr.bf16.gmra.mrb[0].mxu0 %v1582
        %v1684 = vpop.f32.mrb[0].mxu0
        %v1685 = vadd.f32 0.0, %v1684
        %v1686 = vpop.f32.mrb[0].mxu0
        %v1687 = vpop.f32.mrb[0].mxu0
        %v1688 = vadd.f32 0.0, %v1687
        %v1689 = vpop.f32.mrb[0].mxu0
        %1690 = vmatprep.mubr.bf16.mxu0 0
        %1691 = vmatmul.mubr.bf16.gmra.mrb[0].mxu0 %v1585
        %v1692 = vpop.f32.mrb[0].mxu0
        %v1693 = vadd.f32 0.0, %v1692
        %v1694 = vpop.f32.mrb[0].mxu0
        %v1695 = vpop.f32.mrb[0].mxu0
        %v1696 = vadd.f32 0.0, %v1695
        %v1697 = vpop.f32.mrb[0].mxu0
        %1698 = vmatprep.mubr.bf16.mxu0 0
        %1699 = vmatmul.mubr.bf16.gmra.mrb[0].mxu0 %v1588
        %v1700 = vpop.f32.mrb[0].mxu0
        %v1701 = vadd.f32 0.0, %v1700
        %v1702 = vpop.f32.mrb[0].mxu0
        %v1703 = vpop.f32.mrb[0].mxu0
        %v1704 = vadd.f32 0.0, %v1703
        %v1705 = vpop.f32.mrb[0].mxu0
        %1706 = vmatprep.mubr.bf16.mxu0 0
        %1707 = vmatmul.mubr.bf16.gmra.mrb[0].mxu0 %v1591
        %v1708 = vpop.f32.mrb[0].mxu0
        %v1709 = vadd.f32 0.0, %v1708
        %v1710 = vpop.f32.mrb[0].mxu0
        %v1711 = vpop.f32.mrb[0].mxu0
        %v1712 = vadd.f32 0.0, %v1711
        %v1713 = vpop.f32.mrb[0].mxu0
        %1714 = vmatprep.mubr.bf16.mxu0 0
        %1715 = vmatmul.mubr.bf16.gmra.mrb[0].mxu0 %v1594
        %v1716 = vpop.f32.mrb[0].mxu0
        %v1717 = vadd.f32 0.0, %v1716
        %v1718 = vpop.f32.mrb[0].mxu0
        %v1719 = vpop.f32.mrb[0].mxu0
        %v1720 = vadd.f32 0.0, %v1719
        %v1721 = vpop.f32.mrb[0].mxu0
        %1722 = vmatprep.mubr.bf16.mxu0 0
        %1723 = vmatmul.mubr.bf16.gmra.mrb[0].mxu0 %v1597
        %v1724 = vpop.f32.mrb[0].mxu0
        %v1725 = vadd.f32 0.0, %v1724
        %v1726 = vpop.f32.mrb[0].mxu0
        %v1727 = vpop.f32.mrb[0].mxu0
        %v1728 = vadd.f32 0.0, %v1727
        %v1729 = vpop.f32.mrb[0].mxu0
        %1730 = vmatprep.mubr.bf16.mxu0 0
        %1731 = vmatmul.mubr.bf16.gmra.mrb[0].mxu0 %v1600
        %v1732 = vpop.f32.mrb[0].mxu0
        %v1733 = vadd.f32 0.0, %v1732
        %v1734 = vpop.f32.mrb[0].mxu0
        %v1735 = vpop.f32.mrb[0].mxu0
        %v1736 = vadd.f32 0.0, %v1735
        %v1737 = vpop.f32.mrb[0].mxu0
        %1738 = vmatprep.mubr.bf16.mxu0 0
        %1739 = vmatmul.mubr.bf16.gmra.mrb[0].mxu0 %v1603
        %v1740 = vpop.f32.mrb[0].mxu0
        %v1741 = vadd.f32 0.0, %v1740
        %v1742 = vpop.f32.mrb[0].mxu0
        %v1743 = vpop.f32.mrb[0].mxu0
        %v1744 = vadd.f32 0.0, %v1743
        %v1745 = vpop.f32.mrb[0].mxu0
        %1746 = vmatprep.mubr.bf16.mxu0 0
        %1747 = vmatmul.mubr.bf16.gmra.mrb[0].mxu0 %v1606
        %v1748 = vpop.f32.mrb[0].mxu0
        %v1749 = vadd.f32 0.0, %v1748
        %v1750 = vpop.f32.mrb[0].mxu0
        %v1751 = vpop.f32.mrb[0].mxu0
        %v1752 = vadd.f32 0.0, %v1751
        %v1753 = vpop.f32.mrb[0].mxu0
        %1754 = vmatprep.mubr.bf16.mxu0 0
        %1755 = vmatmul.mubr.bf16.gmra.mrb[0].mxu0 %v1609
        %v1756 = vpop.f32.mrb[0].mxu0
        %v1757 = vadd.f32 0.0, %v1756
        %v1758 = vpop.f32.mrb[0].mxu0
        %v1759 = vpop.f32.mrb[0].mxu0
        %v1760 = vadd.f32 0.0, %v1759
        %v1761 = vpop.f32.mrb[0].mxu0
        %1762 = vmatprep.mubr.bf16.mxu0 0
        %1763 = vmatmul.mubr.bf16.gmra.mrb[0].mxu0 %v1612
        %v1764 = vpop.f32.mrb[0].mxu0
        %v1765 = vadd.f32 0.0, %v1764
        %v1766 = vpop.f32.mrb[0].mxu0
        %v1767 = vpop.f32.mrb[0].mxu0
        %v1768 = vadd.f32 0.0, %v1767
        %v1769 = vpop.f32.mrb[0].mxu0
        %1770 = vmatprep.mubr.bf16.mxu0 0
        %1771 = vmatmul.mubr.bf16.gmra.mrb[0].mxu0 %v1615
        %v1772 = vpop.f32.mrb[0].mxu0
        %v1773 = vadd.f32 0.0, %v1772
        %v1774 = vpop.f32.mrb[0].mxu0
        %v1775 = vpop.f32.mrb[0].mxu0
        %v1776 = vadd.f32 0.0, %v1775
        %v1777 = vpop.f32.mrb[0].mxu0
        %1778 = vmatprep.mubr.bf16.mxu0 0
        %1779 = vmatmul.mubr.bf16.gmra.mrb[0].mxu0 %v1618
        %v1780 = vpop.f32.mrb[0].mxu0
        %v1781 = vadd.f32 0.0, %v1780
        %v1782 = vpop.f32.mrb[0].mxu0
        %v1783 = vpop.f32.mrb[0].mxu0
        %v1784 = vadd.f32 0.0, %v1783
        %v1785 = vpop.f32.mrb[0].mxu0
        %1786 = vmatprep.mubr.bf16.mxu0 0
        %1787 = vmatmul.mubr.bf16.gmra.mrb[0].mxu0 %v1621
        %v1788 = vpop.f32.mrb[0].mxu0
        %v1789 = vadd.f32 0.0, %v1788
        %v1790 = vpop.f32.mrb[0].mxu0
        %v1791 = vpop.f32.mrb[0].mxu0
        %v1792 = vadd.f32 0.0, %v1791
        %v1793 = vpop.f32.mrb[0].mxu0
        %1794 = vdwg.mxu0
        %v1795 = vadd.f32 %v1389, %v1661
        %v1796 = vadd.f32 %v1390, %v1664
        %v1797 = vadd.f32 %v1391, %v1669
        %v1798 = vadd.f32 %v1392, %v1672
        %v1799 = vadd.f32 %v1393, %v1677
        %v1800 = vadd.f32 %v1394, %v1680
        %v1801 = vadd.f32 %v1395, %v1685
        %v1802 = vadd.f32 %v1396, %v1688
        %v1803 = vadd.f32 %v1397, %v1693
        %v1804 = vadd.f32 %v1398, %v1696
        %v1805 = vadd.f32 %v1399, %v1701
        %v1806 = vadd.f32 %v1400, %v1704
        %v1807 = vadd.f32 %v1401, %v1709
        %v1808 = vadd.f32 %v1402, %v1712
        %v1809 = vadd.f32 %v1403, %v1717
        %v1810 = vadd.f32 %v1404, %v1720
        %v1811 = vadd.f32 %v1405, %v1725
        %v1812 = vadd.f32 %v1406, %v1728
        %v1813 = vadd.f32 %v1407, %v1733
        %v1814 = vadd.f32 %v1408, %v1736
        %v1815 = vadd.f32 %v1409, %v1741
        %v1816 = vadd.f32 %v1410, %v1744
        %v1817 = vadd.f32 %v1411, %v1749
        %v1818 = vadd.f32 %v1412, %v1752
        %v1819 = vadd.f32 %v1413, %v1757
        %v1820 = vadd.f32 %v1414, %v1760
        %v1821 = vadd.f32 %v1415, %v1765
        %v1822 = vadd.f32 %v1416, %v1768
        %v1823 = vadd.f32 %v1417, %v1773
        %v1824 = vadd.f32 %v1418, %v1776
        %v1825 = vadd.f32 %v1419, %v1781
        %v1826 = vadd.f32 %v1420, %v1784
        %v1827 = vadd.f32 %v1421, %v1789
        %v1828 = vadd.f32 %v1422, %v1792
        %v1829 = vld [vmem:[#allocation9] sm:$0x1]
        %v1831 = vlaneseq
        %v1832 = vshrl.u32 %v1831, 7
        %v1833 = vsub.s32 0, %v1832
        %v1834 = vrot.slane %v1829, %v1833
        %v1836 = vmul.f32 %v1795, %v1834
        %v1837 = vmul.f32 %v1796, %v1834
        %v1838 = vmul.f32 %v1797, %v1834
        %v1839 = vmul.f32 %v1798, %v1834
        %v1840 = vmul.f32 %v1799, %v1834
        %v1841 = vmul.f32 %v1800, %v1834
        %v1842 = vmul.f32 %v1801, %v1834
        %v1843 = vmul.f32 %v1802, %v1834
        %v1844 = vmul.f32 %v1803, %v1834
        %v1845 = vmul.f32 %v1804, %v1834
        %v1846 = vmul.f32 %v1805, %v1834
        %v1847 = vmul.f32 %v1806, %v1834
        %v1848 = vmul.f32 %v1807, %v1834
        %v1849 = vmul.f32 %v1808, %v1834
        %v1850 = vmul.f32 %v1809, %v1834
        %v1851 = vmul.f32 %v1810, %v1834
        %v1852 = vmul.f32 %v1811, %v1834
        %v1853 = vmul.f32 %v1812, %v1834
        %v1854 = vmul.f32 %v1813, %v1834
        %v1855 = vmul.f32 %v1814, %v1834
        %v1856 = vmul.f32 %v1815, %v1834
        %v1857 = vmul.f32 %v1816, %v1834
        %v1858 = vmul.f32 %v1817, %v1834
        %v1859 = vmul.f32 %v1818, %v1834
        %v1860 = vmul.f32 %v1819, %v1834
        %v1861 = vmul.f32 %v1820, %v1834
        %v1862 = vmul.f32 %v1821, %v1834
        %v1863 = vmul.f32 %v1822, %v1834
        %v1864 = vmul.f32 %v1823, %v1834
        %v1865 = vmul.f32 %v1824, %v1834
        %v1866 = vmul.f32 %v1825, %v1834
        %v1867 = vmul.f32 %v1826, %v1834
        %v1868 = vmul.f32 %v1827, %v1834
        %v1869 = vmul.f32 %v1828, %v1834
        %v1870 = vld [vmem:[#allocation10] sm:$0x1]
        %v1872 = vlaneseq
        %v1873 = vshrl.u32 %v1872, 7
        %v1874 = vsub.s32 0, %v1873
        %v1875 = vrot.slane %v1870, %v1874
        %v1877 = vadd.f32 %v1836, %v1875
        %v1878 = vadd.f32 %v1837, %v1875
        %v1879 = vadd.f32 %v1838, %v1875
        %v1880 = vadd.f32 %v1839, %v1875
        %v1881 = vadd.f32 %v1840, %v1875
        %v1882 = vadd.f32 %v1841, %v1875
        %v1883 = vadd.f32 %v1842, %v1875
        %v1884 = vadd.f32 %v1843, %v1875
        %v1885 = vadd.f32 %v1844, %v1875
        %v1886 = vadd.f32 %v1845, %v1875
        %v1887 = vadd.f32 %v1846, %v1875
        %v1888 = vadd.f32 %v1847, %v1875
        %v1889 = vadd.f32 %v1848, %v1875
        %v1890 = vadd.f32 %v1849, %v1875
        %v1891 = vadd.f32 %v1850, %v1875
        %v1892 = vadd.f32 %v1851, %v1875
        %v1893 = vadd.f32 %v1852, %v1875
        %v1894 = vadd.f32 %v1853, %v1875
        %v1895 = vadd.f32 %v1854, %v1875
        %v1896 = vadd.f32 %v1855, %v1875
        %v1897 = vadd.f32 %v1856, %v1875
        %v1898 = vadd.f32 %v1857, %v1875
        %v1899 = vadd.f32 %v1858, %v1875
        %v1900 = vadd.f32 %v1859, %v1875
        %v1901 = vadd.f32 %v1860, %v1875
        %v1902 = vadd.f32 %v1861, %v1875
        %v1903 = vadd.f32 %v1862, %v1875
        %v1904 = vadd.f32 %v1863, %v1875
        %v1905 = vadd.f32 %v1864, %v1875
        %v1906 = vadd.f32 %v1865, %v1875
        %v1907 = vadd.f32 %v1866, %v1875
        %v1908 = vadd.f32 %v1867, %v1875
        %v1909 = vadd.f32 %v1868, %v1875
        %v1910 = vadd.f32 %v1869, %v1875
        %v1911 = vmax.f32 %v1877, 0.0
        %v1912 = vmax.f32 %v1878, 0.0
        %v1913 = vmax.f32 %v1879, 0.0
        %v1914 = vmax.f32 %v1880, 0.0
        %v1915 = vmax.f32 %v1881, 0.0
        %v1916 = vmax.f32 %v1882, 0.0
        %v1917 = vmax.f32 %v1883, 0.0
        %v1918 = vmax.f32 %v1884, 0.0
        %v1919 = vmax.f32 %v1885, 0.0
        %v1920 = vmax.f32 %v1886, 0.0
        %v1921 = vmax.f32 %v1887, 0.0
        %v1922 = vmax.f32 %v1888, 0.0
        %v1923 = vmax.f32 %v1889, 0.0
        %v1924 = vmax.f32 %v1890, 0.0
        %v1925 = vmax.f32 %v1891, 0.0
        %v1926 = vmax.f32 %v1892, 0.0
        %v1927 = vmax.f32 %v1893, 0.0
        %v1928 = vmax.f32 %v1894, 0.0
        %v1929 = vmax.f32 %v1895, 0.0
        %v1930 = vmax.f32 %v1896, 0.0
        %v1931 = vmax.f32 %v1897, 0.0
        %v1932 = vmax.f32 %v1898, 0.0
        %v1933 = vmax.f32 %v1899, 0.0
        %v1934 = vmax.f32 %v1900, 0.0
        %v1935 = vmax.f32 %v1901, 0.0
        %v1936 = vmax.f32 %v1902, 0.0
        %v1937 = vmax.f32 %v1903, 0.0
        %v1938 = vmax.f32 %v1904, 0.0
        %v1939 = vmax.f32 %v1905, 0.0
        %v1940 = vmax.f32 %v1906, 0.0
        %v1941 = vmax.f32 %v1907, 0.0
        %v1942 = vmax.f32 %v1908, 0.0
        %v1943 = vmax.f32 %v1909, 0.0
        %v1944 = vmax.f32 %v1910, 0.0
        %1945 = vst [vmem:[#allocation2] sm:$0xff] 0.0
        %1946 = vst [vmem:[#allocation2 + $0x18] sm:$0xff] 0.0
        %1947 = vst [vmem:[#allocation2 + $0x30] sm:$0xff] 0.0
        %1948 = vst [vmem:[#allocation2 + $0x48] sm:$0xff] 0.0
        %1949 = vst [vmem:[#allocation2 + $0x60] sm:$0xff] 0.0
        %1950 = vst [vmem:[#allocation2 + $0x78] sm:$0xff] 0.0
        %1951 = vst [vmem:[#allocation2 + $0x90] sm:$0xff] 0.0
        %1952 = vst [vmem:[#allocation2 + $0xa8] sm:$0xff] 0.0
        %1953 = vst [vmem:[#allocation2 + $0xc0] sm:$0xff] 0.0
        %1954 = vst [vmem:[#allocation2 + $0xd8] sm:$0xff] 0.0
        %1955 = vst [vmem:[#allocation2 + $0xf0] sm:$0xff] 0.0
        %1956 = vst [vmem:[#allocation2 + $0x108] sm:$0xff] 0.0
        %1957 = vst [vmem:[#allocation2 + $0x120] sm:$0xff] 0.0
        %1958 = vst [vmem:[#allocation2 + $0x138] sm:$0xff] 0.0
        %1959 = vst [vmem:[#allocation2 + $0x150] sm:$0xff] 0.0
        %1960 = vst [vmem:[#allocation2 + $0x168] sm:$0xff] 0.0
        %1961 = vst [vmem:[#allocation2 + $0x180] sm:$0xff] 0.0
        %1962 = vst [vmem:[#allocation2 + $0x8] sm:$0xff] %v1911
        %1963 = vst [vmem:[#allocation2 + $0x10] sm:$0xff] %v1912
        %1964 = vst [vmem:[#allocation2 + $0x20] sm:$0xff] %v1913
        %1965 = vst [vmem:[#allocation2 + $0x28] sm:$0xff] %v1914
        %1966 = vst [vmem:[#allocation2 + $0x38] sm:$0xff] %v1915
        %1967 = vst [vmem:[#allocation2 + $0x40] sm:$0xff] %v1916
        %1968 = vst [vmem:[#allocation2 + $0x50] sm:$0xff] %v1917
        %1969 = vst [vmem:[#allocation2 + $0x58] sm:$0xff] %v1918
        %1970 = vst [vmem:[#allocation2 + $0x68] sm:$0xff] %v1919
        %1971 = vst [vmem:[#allocation2 + $0x70] sm:$0xff] %v1920
        %1972 = vst [vmem:[#allocation2 + $0x80] sm:$0xff] %v1921
        %1973 = vst [vmem:[#allocation2 + $0x88] sm:$0xff] %v1922
        %1974 = vst [vmem:[#allocation2 + $0x98] sm:$0xff] %v1923
        %1975 = vst [vmem:[#allocation2 + $0xa0] sm:$0xff] %v1924
        %1976 = vst [vmem:[#allocation2 + $0xb0] sm:$0xff] %v1925
        %1977 = vst [vmem:[#allocation2 + $0xb8] sm:$0xff] %v1926
        %1978 = vst [vmem:[#allocation2 + $0xc8] sm:$0xff] %v1927
        %1979 = vst [vmem:[#allocation2 + $0xd0] sm:$0xff] %v1928
        %1980 = vst [vmem:[#allocation2 + $0xe0] sm:$0xff] %v1929
        %1981 = vst [vmem:[#allocation2 + $0xe8] sm:$0xff] %v1930
        %1982 = vst [vmem:[#allocation2 + $0xf8] sm:$0xff] %v1931
        %1983 = vst [vmem:[#allocation2 + $0x100] sm:$0xff] %v1932
        %1984 = vst [vmem:[#allocation2 + $0x110] sm:$0xff] %v1933
        %1985 = vst [vmem:[#allocation2 + $0x118] sm:$0xff] %v1934
        %1986 = vst [vmem:[#allocation2 + $0x128] sm:$0xff] %v1935
        %1987 = vst [vmem:[#allocation2 + $0x130] sm:$0xff] %v1936
        %1988 = vst [vmem:[#allocation2 + $0x140] sm:$0xff] %v1937
        %1989 = vst [vmem:[#allocation2 + $0x148] sm:$0xff] %v1938
        %1990 = vst [vmem:[#allocation2 + $0x158] sm:$0xff] %v1939
        %1991 = vst [vmem:[#allocation2 + $0x160] sm:$0xff] %v1940
        %1992 = vst [vmem:[#allocation2 + $0x170] sm:$0xff] %v1941
        %1993 = vst [vmem:[#allocation2 + $0x178] sm:$0xff] %v1942
        %1994 = vst [vmem:[#allocation2 + $0x188] sm:$0xff] %v1943
        %1995 = vst [vmem:[#allocation2 + $0x190] sm:$0xff] %v1944
        %p1996 = scmp.eq.s32.totalorder %s28, 0
        // Predicated region
        $region53: #{prefix_resnet_forward.1} parent=35 // pred_check
          %p1997 = pneg %p1996
        $region54: #{prefix_resnet_forward.1} parent=35 // pred_check_branch
          %1999 = sbr.rel (%p1997) target = $region56
        $region55: #{prefix_resnet_forward.1} parent=35 // pred_region
          %2000 = vst [vmem:[#allocation2] sm:$0xff] 0.0
          %2001 = vst [vmem:[#allocation2 + $0x8] sm:$0xff] 0.0
          %2002 = vst [vmem:[#allocation2 + $0x10] sm:$0xff] 0.0
        $region56: #{prefix_resnet_forward.1} parent=35 // pred_fallthru
          _
        %s2003 = scalar_lea.vmem [#allocation2], 7
        %v2004 = vld [vmem:[%s2003] ss:$2 sm:$0xff]
        %s2005 = scalar_lea.vmem [#allocation2], 31
        %v2006 = vld [vmem:[%s2005] ss:$2 sm:$0xff]
        %s2007 = scalar_lea.vmem [#allocation2], 55
        %v2008 = vld [vmem:[%s2007] ss:$2 sm:$0xff]
        %s2009 = scalar_lea.vmem [#allocation2], 79
        %v2010 = vld [vmem:[%s2009] ss:$2 sm:$0xff]
        %s2011 = scalar_lea.vmem [#allocation2], 103
        %v2012 = vld [vmem:[%s2011] ss:$2 sm:$0xff]
        %s2013 = scalar_lea.vmem [#allocation2], 127
        %v2014 = vld [vmem:[%s2013] ss:$2 sm:$0xff]
        %s2015 = scalar_lea.vmem [#allocation2], 151
        %v2016 = vld [vmem:[%s2015] ss:$2 sm:$0xff]
        %s2017 = scalar_lea.vmem [#allocation2], 175
        %v2018 = vld [vmem:[%s2017] ss:$2 sm:$0xff]
        %s2019 = scalar_lea.vmem [#allocation2], 199
        %v2020 = vld [vmem:[%s2019] ss:$2 sm:$0xff]
        %s2021 = scalar_lea.vmem [#allocation2], 223
        %v2022 = vld [vmem:[%s2021] ss:$2 sm:$0xff]
        %s2023 = scalar_lea.vmem [#allocation2], 247
        %v2024 = vld [vmem:[%s2023] ss:$2 sm:$0xff]
        %s2025 = scalar_lea.vmem [#allocation2], 271
        %v2026 = vld [vmem:[%s2025] ss:$2 sm:$0xff]
        %s2027 = scalar_lea.vmem [#allocation2], 295
        %v2028 = vld [vmem:[%s2027] ss:$2 sm:$0xff]
        %s2029 = scalar_lea.vmem [#allocation2], 319
        %v2030 = vld [vmem:[%s2029] ss:$2 sm:$0xff]
        %s2031 = scalar_lea.vmem [#allocation2], 343
        %v2032 = vld [vmem:[%s2031] ss:$2 sm:$0xff]
        %s2033 = scalar_lea.vmem [#allocation2], 367
        %v2034 = vld [vmem:[%s2033] ss:$2 sm:$0xff]
        %s2035 = scalar_lea.vmem [#allocation2], 391
        %v2036 = vld [vmem:[%s2035] ss:$2 sm:$0xff]
        %s2037 = scalar_lea.vmem [#allocation2], 8
        %v2038 = vld [vmem:[%s2037] ss:$2 sm:$0xff]
        %s2039 = scalar_lea.vmem [#allocation2], 32
        %v2040 = vld [vmem:[%s2039] ss:$2 sm:$0xff]
        %s2041 = scalar_lea.vmem [#allocation2], 56
        %v2042 = vld [vmem:[%s2041] ss:$2 sm:$0xff]
        %s2043 = scalar_lea.vmem [#allocation2], 80
        %v2044 = vld [vmem:[%s2043] ss:$2 sm:$0xff]
        %s2045 = scalar_lea.vmem [#allocation2], 104
        %v2046 = vld [vmem:[%s2045] ss:$2 sm:$0xff]
        %s2047 = scalar_lea.vmem [#allocation2], 128
        %v2048 = vld [vmem:[%s2047] ss:$2 sm:$0xff]
        %s2049 = scalar_lea.vmem [#allocation2], 152
        %v2050 = vld [vmem:[%s2049] ss:$2 sm:$0xff]
        %s2051 = scalar_lea.vmem [#allocation2], 176
        %v2052 = vld [vmem:[%s2051] ss:$2 sm:$0xff]
        %s2053 = scalar_lea.vmem [#allocation2], 200
        %v2054 = vld [vmem:[%s2053] ss:$2 sm:$0xff]
        %s2055 = scalar_lea.vmem [#allocation2], 224
        %v2056 = vld [vmem:[%s2055] ss:$2 sm:$0xff]
        %s2057 = scalar_lea.vmem [#allocation2], 248
        %v2058 = vld [vmem:[%s2057] ss:$2 sm:$0xff]
        %s2059 = scalar_lea.vmem [#allocation2], 272
        %v2060 = vld [vmem:[%s2059] ss:$2 sm:$0xff]
        %s2061 = scalar_lea.vmem [#allocation2], 296
        %v2062 = vld [vmem:[%s2061] ss:$2 sm:$0xff]
        %s2063 = scalar_lea.vmem [#allocation2], 320
        %v2064 = vld [vmem:[%s2063] ss:$2 sm:$0xff]
        %s2065 = scalar_lea.vmem [#allocation2], 344
        %v2066 = vld [vmem:[%s2065] ss:$2 sm:$0xff]
        %s2067 = scalar_lea.vmem [#allocation2], 368
        %v2068 = vld [vmem:[%s2067] ss:$2 sm:$0xff]
        %s2069 = scalar_lea.vmem [#allocation2], 392
        %v2070 = vld [vmem:[%s2069] ss:$2 sm:$0xff]
        %s2071 = scalar_lea.vmem [#allocation2], 9
        %v2072 = vld [vmem:[%s2071] ss:$2 sm:$0xff]
        %s2073 = scalar_lea.vmem [#allocation2], 33
        %v2074 = vld [vmem:[%s2073] ss:$2 sm:$0xff]
        %s2075 = scalar_lea.vmem [#allocation2], 57
        %v2076 = vld [vmem:[%s2075] ss:$2 sm:$0xff]
        %s2077 = scalar_lea.vmem [#allocation2], 81
        %v2078 = vld [vmem:[%s2077] ss:$2 sm:$0xff]
        %s2079 = scalar_lea.vmem [#allocation2], 105
        %v2080 = vld [vmem:[%s2079] ss:$2 sm:$0xff]
        %s2081 = scalar_lea.vmem [#allocation2], 129
        %v2082 = vld [vmem:[%s2081] ss:$2 sm:$0xff]
        %s2083 = scalar_lea.vmem [#allocation2], 153
        %v2084 = vld [vmem:[%s2083] ss:$2 sm:$0xff]
        %s2085 = scalar_lea.vmem [#allocation2], 177
        %v2086 = vld [vmem:[%s2085] ss:$2 sm:$0xff]
        %s2087 = scalar_lea.vmem [#allocation2], 201
        %v2088 = vld [vmem:[%s2087] ss:$2 sm:$0xff]
        %s2089 = scalar_lea.vmem [#allocation2], 225
        %v2090 = vld [vmem:[%s2089] ss:$2 sm:$0xff]
        %s2091 = scalar_lea.vmem [#allocation2], 249
        %v2092 = vld [vmem:[%s2091] ss:$2 sm:$0xff]
        %s2093 = scalar_lea.vmem [#allocation2], 273
        %v2094 = vld [vmem:[%s2093] ss:$2 sm:$0xff]
        %s2095 = scalar_lea.vmem [#allocation2], 297
        %v2096 = vld [vmem:[%s2095] ss:$2 sm:$0xff]
        %s2097 = scalar_lea.vmem [#allocation2], 321
        %v2098 = vld [vmem:[%s2097] ss:$2 sm:$0xff]
        %s2099 = scalar_lea.vmem [#allocation2], 345
        %v2100 = vld [vmem:[%s2099] ss:$2 sm:$0xff]
        %s2101 = scalar_lea.vmem [#allocation2], 369
        %v2102 = vld [vmem:[%s2101] ss:$2 sm:$0xff]
        %s2103 = scalar_lea.vmem [#allocation2], 393
        %v2104 = vld [vmem:[%s2103] ss:$2 sm:$0xff]
        %v2105 = vmax.f32 %v2004, %v2072
        %v2106 = vmax.f32 %v2006, %v2074
        %v2107 = vmax.f32 %v2008, %v2076
        %v2108 = vmax.f32 %v2010, %v2078
        %v2109 = vmax.f32 %v2012, %v2080
        %v2110 = vmax.f32 %v2014, %v2082
        %v2111 = vmax.f32 %v2016, %v2084
        %v2112 = vmax.f32 %v2018, %v2086
        %v2113 = vmax.f32 %v2020, %v2088
        %v2114 = vmax.f32 %v2022, %v2090
        %v2115 = vmax.f32 %v2024, %v2092
        %v2116 = vmax.f32 %v2026, %v2094
        %v2117 = vmax.f32 %v2028, %v2096
        %v2118 = vmax.f32 %v2030, %v2098
        %v2119 = vmax.f32 %v2032, %v2100
        %v2120 = vmax.f32 %v2034, %v2102
        %v2121 = vmax.f32 %v2036, %v2104
        %v2122 = vmax.f32 %v2038, %v2105
        %v2123 = vmax.f32 %v2040, %v2106
        %v2124 = vmax.f32 %v2042, %v2107
        %v2125 = vmax.f32 %v2044, %v2108
        %v2126 = vmax.f32 %v2046, %v2109
        %v2127 = vmax.f32 %v2048, %v2110
        %v2128 = vmax.f32 %v2050, %v2111
        %v2129 = vmax.f32 %v2052, %v2112
        %v2130 = vmax.f32 %v2054, %v2113
        %v2131 = vmax.f32 %v2056, %v2114
        %v2132 = vmax.f32 %v2058, %v2115
        %v2133 = vmax.f32 %v2060, %v2116
        %v2134 = vmax.f32 %v2062, %v2117
        %v2135 = vmax.f32 %v2064, %v2118
        %v2136 = vmax.f32 %v2066, %v2119
        %v2137 = vmax.f32 %v2068, %v2120
        %v2138 = vmax.f32 %v2070, %v2121
        %2139 = vst [vmem:[#allocation3] sm:$0xff] %v2122
        %2140 = vst [vmem:[#allocation3 + $0x8] sm:$0xff] %v2123
        %2141 = vst [vmem:[#allocation3 + $0x10] sm:$0xff] %v2124
        %2142 = vst [vmem:[#allocation3 + $0x18] sm:$0xff] %v2125
        %2143 = vst [vmem:[#allocation3 + $0x20] sm:$0xff] %v2126
        %2144 = vst [vmem:[#allocation3 + $0x28] sm:$0xff] %v2127
        %2145 = vst [vmem:[#allocation3 + $0x30] sm:$0xff] %v2128
        %2146 = vst [vmem:[#allocation3 + $0x38] sm:$0xff] %v2129
        %2147 = vst [vmem:[#allocation3 + $0x40] sm:$0xff] %v2130
        %2148 = vst [vmem:[#allocation3 + $0x48] sm:$0xff] %v2131
        %2149 = vst [vmem:[#allocation3 + $0x50] sm:$0xff] %v2132
        %2150 = vst [vmem:[#allocation3 + $0x58] sm:$0xff] %v2133
        %2151 = vst [vmem:[#allocation3 + $0x60] sm:$0xff] %v2134
        %2152 = vst [vmem:[#allocation3 + $0x68] sm:$0xff] %v2135
        %2153 = vst [vmem:[#allocation3 + $0x70] sm:$0xff] %v2136
        %2154 = vst [vmem:[#allocation3 + $0x78] sm:$0xff] %v2137
        %2155 = vst [vmem:[#allocation3 + $0x80] sm:$0xff] %v2138
        %v2156 = vld [vmem:[#allocation3] sm:$0xff]
        %v2157 = vld [vmem:[#allocation3 + $0x10] sm:$0xff]
        %v2158 = vld [vmem:[#allocation3 + $0x20] sm:$0xff]
        %v2159 = vld [vmem:[#allocation3 + $0x30] sm:$0xff]
        %v2160 = vld [vmem:[#allocation3 + $0x40] sm:$0xff]
        %v2161 = vld [vmem:[#allocation3 + $0x50] sm:$0xff]
        %v2162 = vld [vmem:[#allocation3 + $0x60] sm:$0xff]
        %v2163 = vld [vmem:[#allocation3 + $0x70] sm:$0xff]
        %s2164 = scalar_lea.vmem [#allocation3], 8
        %v2165 = vld [vmem:[%s2164] sm:$0xff]
        %v2166 = vld [vmem:[%s2164 + $0x10] sm:$0xff]
        %v2167 = vld [vmem:[%s2164 + $0x20] sm:$0xff]
        %v2168 = vld [vmem:[%s2164 + $0x30] sm:$0xff]
        %v2169 = vld [vmem:[%s2164 + $0x40] sm:$0xff]
        %v2170 = vld [vmem:[%s2164 + $0x50] sm:$0xff]
        %v2171 = vld [vmem:[%s2164 + $0x60] sm:$0xff]
        %v2172 = vld [vmem:[%s2164 + $0x70] sm:$0xff]
        %s2173 = scalar_lea.vmem [#allocation3], 16
        %v2174 = vld [vmem:[%s2173] sm:$0xff]
        %v2175 = vld [vmem:[%s2173 + $0x10] sm:$0xff]
        %v2176 = vld [vmem:[%s2173 + $0x20] sm:$0xff]
        %v2177 = vld [vmem:[%s2173 + $0x30] sm:$0xff]
        %v2178 = vld [vmem:[%s2173 + $0x40] sm:$0xff]
        %v2179 = vld [vmem:[%s2173 + $0x50] sm:$0xff]
        %v2180 = vld [vmem:[%s2173 + $0x60] sm:$0xff]
        %v2181 = vld [vmem:[%s2173 + $0x70] sm:$0xff]
        %v2182 = vmax.f32 %v2165, %v2174
        %v2183 = vmax.f32 %v2166, %v2175
        %v2184 = vmax.f32 %v2167, %v2176
        %v2185 = vmax.f32 %v2168, %v2177
        %v2186 = vmax.f32 %v2169, %v2178
        %v2187 = vmax.f32 %v2170, %v2179
        %v2188 = vmax.f32 %v2171, %v2180
        %v2189 = vmax.f32 %v2172, %v2181
        %v2190 = vmax.f32 %v2156, %v2182
        %v2191 = vmax.f32 %v2157, %v2183
        %v2192 = vmax.f32 %v2158, %v2184
        %v2193 = vmax.f32 %v2159, %v2185
        %v2194 = vmax.f32 %v2160, %v2186
        %v2195 = vmax.f32 %v2161, %v2187
        %v2196 = vmax.f32 %v2162, %v2188
        %v2197 = vmax.f32 %v2163, %v2189
        %v2198 = vpack.c.bf16 %v2190, %v2190
        %v2199 = vpack.c.bf16 %v2191, %v2191
        %v2200 = vpack.c.bf16 %v2192, %v2192
        %v2201 = vpack.c.bf16 %v2193, %v2193
        %v2202 = vpack.c.bf16 %v2194, %v2194
        %v2203 = vpack.c.bf16 %v2195, %v2195
        %v2204 = vpack.c.bf16 %v2196, %v2196
        %v2205 = vpack.c.bf16 %v2197, %v2197
        %2206 = vst [vmem:[%s269] sm:$0xf] %v2198
        %2207 = vst [vmem:[%s269 + $0x4] sm:$0xf] %v2199
        %2208 = vst [vmem:[%s269 + $0x8] sm:$0xf] %v2200
        %2209 = vst [vmem:[%s269 + $0xc] sm:$0xf] %v2201
        %2210 = vst [vmem:[%s269 + $0x10] sm:$0xf] %v2202
        %2211 = vst [vmem:[%s269 + $0x14] sm:$0xf] %v2203
        %2212 = vst [vmem:[%s269 + $0x18] sm:$0xf] %v2204
        %2213 = vst [vmem:[%s269 + $0x1c] sm:$0xf] %v2205
        %s2214 = sand.u32 %s134, 1
        %s2215 = scalar_lea.sflag [#allocation6], %s2214
        %s2216 = sand.u32 %s134, 1
        %s2217 = smul.addr %s2216, 32
        %s2218 = scalar_lea.vmem [#allocation12], %s2217
        // Predicated region
        $region57: #{prefix_resnet_forward.1} parent=35 // pred_check
          %p2219 = pneg %p144
        $region58: #{prefix_resnet_forward.1} parent=35 // pred_check_branch
          %2221 = sbr.rel (%p2219) target = $region60
        $region59: #{prefix_resnet_forward.1} parent=35 // pred_region
          %s2222 = smul.u32 8, %s28
          %s2224 = ssub.s32 512, 512
          %2225 = vsyncadd %s2215, %s2224
          %s2226 = smul.addr %s27, 8
          %s2227 = sadd.s32 %s2222, %s2226
          %s2228 = smul.addr %s2227, 64
          %s2229 = scalar_lea.hbm %s4, %s2228
          %s2230 = sshll.u32 %s2218, 4
          %s2231 = int_to_ptr.vmem [resolvable:$true] %s2230
          %2236 = dma.vmem_to_hbm [thread:$0]  %s2231, 512, %s2229, %s2215, 64, 64, 4
        $region60: #{prefix_resnet_forward.1} parent=35 // pred_fallthru
          _
      $region36: #{prefix_resnet_forward.1} parent=5 // pred_fallthru
        _
      %p2237 = scmp.le.s32.totalorder 2, %s18
      // Predicated region
      $region61: #{prefix_resnet_forward.1} parent=5 // pred_check
        %p2238 = pneg %p2237
      $region62: #{prefix_resnet_forward.1} parent=5 // pred_check_branch
        %2240 = sbr.rel (%p2238) target = $region64
      $region63: #{prefix_resnet_forward.1} parent=5 // pred_region
        %s2241 = ssub.s32 %s18, 2
        // Predicated region
        $region65: #{prefix_resnet_forward.1} parent=63 // pred_check
          %p2242 = pneg %p150
        $region66: #{prefix_resnet_forward.1} parent=63 // pred_check_branch
          %2244 = sbr.rel (%p2242) target = $region68
        $region67: #{prefix_resnet_forward.1} parent=63 // pred_region
          %s2245 = sand.u32 %s135, 1
          %s2246 = scalar_lea.sflag [#allocation6], %s2245
          %s2247 = sand.u32 %s135, 1
          %s2248 = smul.addr %s2247, 32
          %s2249 = scalar_lea.vmem [#allocation12], %s2248
          %2250 = dma.done %s2246, 512
        $region68: #{prefix_resnet_forward.1} parent=63 // pred_fallthru
          _
      $region64: #{prefix_resnet_forward.1} parent=5 // pred_fallthru
        _
    $region6: #{prefix_resnet_forward.1} parent=1 // loop_footer
      %s22 = sadd.s32 1, %s18
    $region7: #{prefix_resnet_forward.1} parent=1 // loop_footer_branch
      %17 = sbr.rel target = $region3
    $region8: #{prefix_resnet_forward.1} parent=1 // loop_exit
      _
    %2251 = vsyncpa [#allocation5], 1
    %s2252 = scalar_lea.sflag [#allocation5], 1
    %2253 = vsyncpa %s2252, 1
    %2254 = vsyncpa [#allocation8], 1
    %2255 = vsyncpa [#allocation11], 1
    %2256 = vsyncpa [#allocation6], 1
    %s2257 = scalar_lea.sflag [#allocation6], 1
    %2258 = vsyncpa %s2257, 1

</llo_original>
